<compile_context>
chip_gen: v5e
topology: v5e:2x2
jax: 0.10.0
libtpu: 0.0.40
codegen_flags: <defaults>
</compile_context>

<pallas_src>
import jax
import jax.numpy as jnp
from jax import lax
from jax.experimental import pallas as pl
from jax.experimental.pallas import tpu as pltpu


# Optional bf16 MXU operands (f32 accumulation).  Off by default so that the
# 5e-3 numerical check on the second-moment / covariance path stays comfortable.
MXU_BF16 = False


def _mxu(x):
    return x.astype(jnp.bfloat16) if MXU_BF16 else x


def _pick_tile(dim, cap, align):
    """Largest tile <= cap that divides `dim` and is a multiple of `align`;
    falls back to the full dim (always a legal full-extent block).  With the
    flat (C, A*A) layout the fallback blocks stay small, so this is safe."""
    if dim <= cap:
        return dim
    t = (cap // align) * align
    while t >= align:
        if dim % t == 0:
            return t
        t -= align
    return dim


# ----------------------------------------------------------------------------
# Kernel 1: EstimatorCV.update_CV
#   grid = (C tiles [parallel], N tiles [reduction]); covariance kept flat.
# ----------------------------------------------------------------------------
def _update_cv_kernel(feat_ref, oht_ref, rep_ref, tile_ref,
                      cov_old_ref, ave_old_ref, amt_ref,
                      cov_ref, ave_ref, amt_new_ref,
                      cnt_acc, fsum_acc, m2_acc):
    j = pl.program_id(1)

    @pl.when(j == 0)
    def _():
        cnt_acc[...] = jnp.zeros_like(cnt_acc)
        fsum_acc[...] = jnp.zeros_like(fsum_acc)
        m2_acc[...] = jnp.zeros_like(m2_acc)

    f = feat_ref[...]                                           # (Nt, A)
    oh = oht_ref[...]                                           # (Cb, Nt)
    cnt_acc[...] += jnp.sum(oh, axis=1, keepdims=True)          # per-class counts
    fsum_acc[...] += jnp.dot(oh, f, preferred_element_type=jnp.float32)   # (Cb, A)
    # Lane-dense second moments: P[n, a*A+b] = f[n,a] * f[n,b] built with
    # constant repeat/tile expansion matmuls (no reshape), then one flat
    # (Cb,Nt)@(Nt,A^2) MXU matmul -> full 128-lane utilization.
    fl = jnp.dot(f, rep_ref[...], preferred_element_type=jnp.float32)     # (Nt, A^2)
    fr = jnp.dot(f, tile_ref[...], preferred_element_type=jnp.float32)    # (Nt, A^2)
    m2_acc[...] += jnp.dot(oh, fl * fr, preferred_element_type=jnp.float32)

    @pl.when(j == pl.num_programs(1) - 1)
    def _():
        counts = cnt_acc[...]                                   # (Cb, 1)
        denom = jnp.where(counts == 0.0, 1.0, counts)           # Amount_CxA[==0]=1
        ave = fsum_acc[...] / denom                             # (Cb, A)
        aL = jnp.dot(ave, rep_ref[...], preferred_element_type=jnp.float32)
        aR = jnp.dot(ave, tile_ref[...], preferred_element_type=jnp.float32)
        # sum_n oh (f-ave)(f-ave)^T / denom  ==  M2/denom - ave ⊗ ave  (flat).
        var = m2_acc[...] / denom - aL * aR                     # (Cb, A^2)
        amount = amt_ref[...]                                   # (Cb, 1)
        total = counts + amount
        w = jnp.where(total == 0.0, 0.0,
                      counts / jnp.where(total == 0.0, 1.0, total))   # weight_CV/AV
        diff = ave_old_ref[...] - ave                           # (Cb, A)
        dL = jnp.dot(diff, rep_ref[...], preferred_element_type=jnp.float32)
        dR = jnp.dot(diff, tile_ref[...], preferred_element_type=jnp.float32)
        cov_ref[...] = (cov_old_ref[...] * (1.0 - w) + var * w
                        + (w * (1.0 - w)) * (dL * dR))          # additional_CV term
        ave_ref[...] = ave_old_ref[...] * (1.0 - w) + ave * w
        amt_new_ref[...] = amount + counts


def update_cv(features, onehot_t, cov_old_flat, ave_old, amount_old,
              rep_mat, tile_mat):
    N, A = features.shape
    C = onehot_t.shape[0]
    AA = A * A
    Cb = _pick_tile(C, 128, 8)
    Nt = _pick_tile(N, 512, 128)
    grid = (C // Cb, N // Nt)
    amount2d = amount_old.reshape(C, 1)
    cov_new, ave_new, amount_new = pl.pallas_call(
        _update_cv_kernel,
        out_shape=(jax.ShapeDtypeStruct((C, AA), jnp.float32),
                   jax.ShapeDtypeStruct((C, A), jnp.float32),
                   jax.ShapeDtypeStruct((C, 1), jnp.float32)),
        grid_spec=pltpu.PrefetchScalarGridSpec(
            num_scalar_prefetch=0, grid=grid,
            in_specs=[
                pl.BlockSpec((Nt, A), lambda i, j: (j, 0)),      # features tile
                pl.BlockSpec((Cb, Nt), lambda i, j: (i, j)),     # onehot^T tile
                pl.BlockSpec((A, AA), lambda i, j: (0, 0)),      # repeat expander
                pl.BlockSpec((A, AA), lambda i, j: (0, 0)),      # tile expander
                pl.BlockSpec((Cb, AA), lambda i, j: (i, 0)),     # CoVariance (old, flat)
                pl.BlockSpec((Cb, A), lambda i, j: (i, 0)),      # Ave (old)
                pl.BlockSpec((Cb, 1), lambda i, j: (i, 0)),      # Amount (old)
            ],
            out_specs=(
                pl.BlockSpec((Cb, AA), lambda i, j: (i, 0)),
                pl.BlockSpec((Cb, A), lambda i, j: (i, 0)),
                pl.BlockSpec((Cb, 1), lambda i, j: (i, 0)),
            ),
            scratch_shapes=[pltpu.VMEM((Cb, 1), jnp.float32),
                            pltpu.VMEM((Cb, A), jnp.float32),
                            pltpu.VMEM((Cb, AA), jnp.float32)]),
        compiler_params=pltpu.CompilerParams(
            dimension_semantics=("parallel", "arbitrary"),
            vmem_limit_bytes=32 * 1024 * 1024),
    )(features, onehot_t, rep_mat, tile_mat, cov_old_flat, ave_old, amount2d)
    return cov_new, ave_new, amount_new.reshape(C)


# ----------------------------------------------------------------------------
# Kernel 2: covariance mixing  new_cv_flat = mix @ cov_flat  (tiled matmul)
#   mix = [ I_head ; kg[head:] ]  -> folds the torch.cat of head rows.
# ----------------------------------------------------------------------------
def _mix_matmul_kernel(a_ref, b_ref, o_ref, acc_ref):
    @pl.when(pl.program_id(2) == 0)
    def _():
        acc_ref[...] = jnp.zeros_like(acc_ref)

    acc_ref[...] += jnp.dot(_mxu(a_ref[...]), _mxu(b_ref[...]),
                            preferred_element_type=jnp.float32)

    @pl.when(pl.program_id(2) == pl.num_programs(2) - 1)
    def _():
        o_ref[...] = acc_ref[...].astype(o_ref.dtype)


def mix_covariances(mix, cov_flat):
    M, K = mix.shape
    _, F2 = cov_flat.shape
    tm = _pick_tile(M, 128, 8)
    tk = _pick_tile(K, 512, 128)
    tn = _pick_tile(F2, 2048, 128)
    grid = (M // tm, F2 // tn, K // tk)
    return pl.pallas_call(
        _mix_matmul_kernel,
        out_shape=jax.ShapeDtypeStruct((M, F2), jnp.float32),
        grid_spec=pltpu.PrefetchScalarGridSpec(
            num_scalar_prefetch=0, grid=grid,
            in_specs=[pl.BlockSpec((tm, tk), lambda i, j, k: (i, k)),
                      pl.BlockSpec((tk, tn), lambda i, j, k: (k, j))],
            out_specs=pl.BlockSpec((tm, tn), lambda i, j, k: (i, j)),
            scratch_shapes=[pltpu.VMEM((tm, tn), jnp.float32)]),
        compiler_params=pltpu.CompilerParams(
            dimension_semantics=("parallel", "parallel", "arbitrary"),
            vmem_limit_bytes=32 * 1024 * 1024),
    )(mix, cov_flat)


# ----------------------------------------------------------------------------
# Kernel 3: RISDA augmentation + weighted cross-entropy
#   grid = (sample tiles [parallel]); per-label rows gathered via one-hot
#   matmuls in-kernel; sigma2/dm expanded algebraically (no (Nb,C,A) temps).
# ----------------------------------------------------------------------------
def _risda_ce_kernel(ys_ref, lab_ref, wm_ref, mean_ref, wrow_ref, cv_ref,
                     rep_ref, tile_ref, ab_ref,
                     aug_ref, pnum_ref, pden_ref):
    alpha = ab_ref[0]
    beta = ab_ref[1]
    ys = ys_ref[...]                                            # (Nb, C)
    nb, c = ys.shape
    lab = lab_ref[...]                                          # (Nb, 1) int32
    oh = (lab == lax.broadcasted_iota(jnp.int32, (nb, c), 1)).astype(jnp.float32)

    wm = wm_ref[...]                                            # (C, A)
    rep = rep_ref[...]                                          # (A, A^2)
    til = tile_ref[...]                                         # (A, A^2)

    # Exact per-label row gathers as one-hot matmuls (no HBM gather round trip).
    w_y = jnp.dot(oh, wm, preferred_element_type=jnp.float32)               # (Nb, A)
    mean_y = jnp.dot(oh, mean_ref[...], preferred_element_type=jnp.float32)  # (Nb, A)
    cvY = jnp.dot(_mxu(oh), _mxu(cv_ref[...]),
                  preferred_element_type=jnp.float32)                        # (Nb, A^2)
    wn = jnp.sum(oh * wrow_ref[...], axis=1, keepdims=True)                  # (Nb, 1)

    # sigma2[n,c] = (wm_c - w_y_n)^T cv_n (wm_c - w_y_n), expanded using cv
    # symmetry (holds by construction) -> only flat MXU matmuls, no dW tensor.
    wm2 = (jnp.dot(wm, rep, preferred_element_type=jnp.float32)
           * jnp.dot(wm, til, preferred_element_type=jnp.float32))           # (C, A^2)
    term1 = lax.dot_general(_mxu(cvY), _mxu(wm2), (((1,), (1,)), ((), ())),
                            preferred_element_type=jnp.float32)              # (Nb, C)
    wyT = jnp.dot(_mxu(w_y), _mxu(til), preferred_element_type=jnp.float32)  # (Nb, A^2)
    q = lax.dot_general(_mxu(cvY * wyT), _mxu(rep), (((1,), (1,)), ((), ())),
                        preferred_element_type=jnp.float32)                  # (Nb, A) = cv_n @ w_y_n
    term2 = lax.dot_general(q, wm, (((1,), (1,)), ((), ())),
                            preferred_element_type=jnp.float32)              # (Nb, C)
    term3 = jnp.sum(q * w_y, axis=1, keepdims=True)                          # (Nb, 1)
    quad = term1 - 2.0 * term2 + term3

    # dm[n,c] = (wm_c - w_y_n) . mean_y_n  distributed algebraically.
    dm = (lax.dot_general(mean_y, wm, (((1,), (1,)), ((), ())),
                          preferred_element_type=jnp.float32)
          - jnp.sum(w_y * mean_y, axis=1, keepdims=True))                    # (Nb, C)

    aug = ys + 0.5 * beta * quad + alpha * dm
    aug_ref[...] = aug                                          # lane-dense store

    # Weighted cross-entropy partial sums for this sample tile.
    m = jnp.max(aug, axis=1, keepdims=True)
    lse = m + jnp.log(jnp.sum(jnp.exp(aug - m), axis=1, keepdims=True))
    picked = jnp.sum(aug * oh, axis=1, keepdims=True)
    pnum_ref[...] = jnp.sum(wn * (lse - picked), keepdims=True).reshape(1, 1, 1)
    pden_ref[...] = jnp.sum(wn, keepdims=True).reshape(1, 1, 1)


def risda_ce(fc_weight, y_s, labels2d, out_new, weights_row, cv_flat,
             rep_mat, tile_mat, ab):
    N, C = y_s.shape
    A = fc_weight.shape[1]
    AA = A * A
    Nb = _pick_tile(N, 128, 8)
    G = N // Nb
    aug, pnum, pden = pl.pallas_call(
        _risda_ce_kernel,
        out_shape=(jax.ShapeDtypeStruct((N, C), jnp.float32),
                   jax.ShapeDtypeStruct((G, 1, 1), jnp.float32),
                   jax.ShapeDtypeStruct((G, 1, 1), jnp.float32)),
        grid_spec=pltpu.PrefetchScalarGridSpec(
            num_scalar_prefetch=0, grid=(G,),
            in_specs=[
                pl.BlockSpec((Nb, C), lambda i: (i, 0)),         # y_s logits
                pl.BlockSpec((Nb, 1), lambda i: (i, 0)),         # labels (int32)
                pl.BlockSpec((C, A), lambda i: (0, 0)),          # fc weight matrix
                pl.BlockSpec((C, A), lambda i: (0, 0)),          # out_new means
                pl.BlockSpec((1, C), lambda i: (0, 0)),          # class weights
                pl.BlockSpec((C, AA), lambda i: (0, 0)),         # new_cv (flat)
                pl.BlockSpec((A, AA), lambda i: (0, 0)),         # repeat expander
                pl.BlockSpec((A, AA), lambda i: (0, 0)),         # tile expander
                pl.BlockSpec(memory_space=pltpu.MemorySpace.SMEM),  # [alpha, beta]
            ],
            out_specs=(
                pl.BlockSpec((Nb, C), lambda i: (i, 0)),         # aug logits
                pl.BlockSpec((1, 1, 1), lambda i: (i, 0, 0)),    # partial num
                pl.BlockSpec((1, 1, 1), lambda i: (i, 0, 0)),    # partial den
            )),
        compiler_params=pltpu.CompilerParams(
            dimension_semantics=("parallel",),
            vmem_limit_bytes=32 * 1024 * 1024),
    )(y_s, labels2d, fc_weight, out_new, weights_row, cv_flat,
      rep_mat, tile_mat, ab)
    return aug, pnum, pden


# ----------------------------------------------------------------------------
# RISDA_CE.forward (functional): returns (loss, aug_y, new_cov, new_ave, new_amount)
# ----------------------------------------------------------------------------
def risda_ce_forward(fc_weight, features, y_s, labels, alpha, weights, kg,
                     out_new, beta, head, cov_state, ave_state, amount_state):
    N, A = features.shape
    C = fc_weight.shape[0]
    AA = A * A

    # Constant expansion matrices: (x @ rep)[k]=x[k//A], (x @ tile)[k]=x[k%A].
    eyeA = jnp.eye(A, dtype=jnp.float32)
    rep_mat = jnp.repeat(eyeA, A, axis=1)                        # (A, A*A)
    tile_mat = jnp.tile(eyeA, (1, A))                            # (A, A*A)

    onehot_t = jnp.transpose(jax.nn.one_hot(labels, C, dtype=jnp.float32))  # (C, N)
    cov_new_flat, ave_new, amount_new = update_cv(
        features, onehot_t, cov_state.reshape(C, AA), ave_state, amount_state,
        rep_mat, tile_mat)

    # Fold torch.cat((cov[:head], kg[head:] @ cov_flat)) into one matmul:
    # identity rows pass the head covariances through exactly.
    # TODO(synk): PyTorch hard-codes `.view(tail, 64, -1)`; A plays the role of 64 here.
    mix = jnp.concatenate(
        [jnp.eye(C, dtype=jnp.float32)[:head], kg[head:]], axis=0)  # (C, C) glue
    new_cv_flat = mix_covariances(mix, cov_new_flat)             # (C, A*A), stays flat

    labels2d = labels.reshape(N, 1).astype(jnp.int32)
    weights_row = weights.reshape(1, C).astype(jnp.float32)
    ab = jnp.concatenate([jnp.asarray(alpha, jnp.float32).ravel(),
                          jnp.asarray(beta, jnp.float32).ravel()])   # [alpha, beta]

    aug_y, pnum, pden = risda_ce(fc_weight, y_s, labels2d, out_new, weights_row,
                                 new_cv_flat, rep_mat, tile_mat, ab)
    loss = jnp.sum(pnum) / jnp.sum(pden)
    return loss, aug_y, new_cv_flat.reshape(C, A, A), ave_new, amount_new


# ----------------------------------------------------------------------------
# Pure-JAX reference for validation
# ----------------------------------------------------------------------------
def reference_forward(fc_weight, features, y_s, labels, alpha, weights, kg,
                      out_new, beta, head, cov0, ave0, amount0):
    N, A = features.shape
    C = fc_weight.shape[0]
    onehot = jax.nn.one_hot(labels, C, dtype=jnp.float32)
    counts = onehot.sum(0)
    denom = jnp.where(counts == 0, 1.0, counts)[:, None]
    fbs = features[:, None, :] * onehot[:, :, None]
    ave = fbs.sum(0) / denom
    var_temp = fbs - ave[None] * onehot[:, :, None]
    var = jnp.einsum('nca,ncb->cab', var_temp, var_temp) / denom[:, :, None]
    total = counts + amount0
    w = jnp.where(total == 0, 0.0, counts / jnp.where(total == 0, 1.0, total))
    w_cv = w[:, None, None]
    w_av = w[:, None]
    diff = ave0 - ave
    add_cv = w_cv * (1 - w_cv) * (diff[:, :, None] * diff[:, None, :])
    cov_new = cov0 * (1 - w_cv) + var * w_cv + add_cv
    cv_flat = cov_new.reshape(C, -1)
    cv_tail = (kg[head:] @ cv_flat).reshape(C - head, A, A)
    new_cv = jnp.concatenate([cov_new[:head], cv_tail], axis=0)
    w_y = fc_weight[labels]
    dW = fc_weight[None] - w_y[:, None]
    cv_y = new_cv[labels]
    sigma2 = beta[0] * jnp.einsum('nca,nab,ncb->nc', dW, cv_y, dW)
    mean_y = out_new[labels]
    dm = jnp.einsum('nca,na->nc', dW, mean_y)
    aug = y_s + 0.5 * sigma2 + alpha[0] * dm
    lse = jax.scipy.special.logsumexp(aug, axis=1)
    logp = aug[jnp.arange(N), labels] - lse
    wn = weights[labels]
    loss = jnp.sum(-wn * logp) / jnp.sum(wn)
    return loss, aug


if __name__ == "__main__":
    key = jax.random.PRNGKey(0)
    N, A, C, head = 8, 32, 8, 4          # batch, feature_num, class_num, head classes
    k1, k2, k3, k4, k5, k6 = jax.random.split(key, 6)

    features = jax.random.normal(k1, (N, A), jnp.float32)
    fc_weight = 0.1 * jax.random.normal(k2, (C, A), jnp.float32)   # fc.named_leaves()[0][1]
    labels = jax.random.randint(k3, (N,), 0, C, jnp.int32)
    y_s = features @ fc_weight.T                                    # logits
    kg = jax.nn.softmax(jax.random.normal(k4, (C, C), jnp.float32), axis=-1)
    out_new = 0.1 * jax.random.normal(k5, (C, A), jnp.float32)
    weights = jnp.abs(jax.random.normal(k6, (C,), jnp.float32)) + 0.5
    alpha = jnp.array([0.5], jnp.float32)
    beta = jnp.array([0.1], jnp.float32)

    # EstimatorCV initial state (as in __init__: zeros)
    cov0 = jnp.zeros((C, A, A), jnp.float32)
    ave0 = jnp.zeros((C, A), jnp.float32)
    amount0 = jnp.zeros((C,), jnp.float32)

    # TODO(synk): __init__'s m_list / s and forward args (manner, feature_mean,
    # the passed-in `cv`) are unused by the forward computation and are omitted.

    loss, aug_y, new_cv, new_ave, new_amount = risda_ce_forward(
        fc_weight, features, y_s, labels, alpha, weights, kg, out_new, beta,
        head, cov0, ave0, amount0)
    jax.block_until_ready(loss)

    loss_ref, aug_ref = reference_forward(
        fc_weight, features, y_s, labels, alpha, weights, kg, out_new, beta,
        head, cov0, ave0, amount0)
    assert jnp.allclose(aug_y, aug_ref, rtol=5e-3, atol=5e-3), (aug_y, aug_ref)
    assert jnp.allclose(loss, loss_ref, rtol=5e-3, atol=5e-3), (loss, loss_ref)

    print("KERNEL_OK")
</pallas_src>

<mosaic_0001>
module attributes {stable_mosaic.version = 11 : i64} {
  func.func @_update_cv_kernel(%arg0: i32, %arg1: i32, %arg2: memref<8x32xf32, #tpu.memory_space<vmem>>, %arg3: memref<8x8xf32, #tpu.memory_space<vmem>>, %arg4: memref<32x1024xf32, #tpu.memory_space<vmem>>, %arg5: memref<32x1024xf32, #tpu.memory_space<vmem>>, %arg6: memref<8x1024xf32, #tpu.memory_space<vmem>>, %arg7: memref<8x32xf32, #tpu.memory_space<vmem>>, %arg8: memref<8x1xf32, #tpu.memory_space<vmem>>, %arg9: memref<8x1024xf32, #tpu.memory_space<vmem>>, %arg10: memref<8x32xf32, #tpu.memory_space<vmem>>, %arg11: memref<8x1xf32, #tpu.memory_space<vmem>>, %arg12: memref<8x1xf32, #tpu.memory_space<vmem>>, %arg13: memref<8x32xf32, #tpu.memory_space<vmem>>, %arg14: memref<8x1024xf32, #tpu.memory_space<vmem>>) attributes {dimension_semantics = [#tpu.dimension_semantics<parallel>, #tpu.dimension_semantics<arbitrary>], iteration_bounds = array<i64: 1, 1>, scalar_prefetch = 0 : i64, scratch_operands = 3 : i64, tpu.core_type = #tpu.core_type<tc>, window_params = [{transform_indices = @transform_0, window_bounds = array<i64: 8, 32>}, {transform_indices = @transform_1, window_bounds = array<i64: 8, 8>}, {pipeline_mode = #tpu.pipeline_mode<synchronous>, transform_indices = @transform_2, window_bounds = array<i64: 32, 1024>}, {pipeline_mode = #tpu.pipeline_mode<synchronous>, transform_indices = @transform_3, window_bounds = array<i64: 32, 1024>}, {transform_indices = @transform_4, window_bounds = array<i64: 8, 1024>}, {transform_indices = @transform_5, window_bounds = array<i64: 8, 32>}, {transform_indices = @transform_6, window_bounds = array<i64: 8, 1>}, {transform_indices = @transform_7, window_bounds = array<i64: 8, 1024>}, {transform_indices = @transform_8, window_bounds = array<i64: 8, 32>}, {transform_indices = @transform_9, window_bounds = array<i64: 8, 1>}]} {
    %c0_i32 = arith.constant 0 : i32
    %0 = arith.cmpi eq, %arg1, %c0_i32 : i32
    %1 = arith.extui %0 : i1 to i32
    %c0_i32_0 = arith.constant 0 : i32
    %2 = arith.cmpi ne, %1, %c0_i32_0 : i32
    scf.if %2 {
      %cst_26 = arith.constant 0.000000e+00 : f32
      %26 = vector.broadcast %cst_26 : f32 to vector<8x1xf32>
      %c0_27 = arith.constant 0 : index
      %c0_28 = arith.constant 0 : index
      %27 = vector.load %arg12[%c0_27, %c0_28] : memref<8x1xf32, #tpu.memory_space<vmem>>, vector<8x1xf32>
      tpu.vector_store %arg12[%c0_27, %c0_28], %26 {strides = array<i32>} : memref<8x1xf32, #tpu.memory_space<vmem>>, vector<8x1xf32>,
      %cst_29 = arith.constant 0.000000e+00 : f32
      %28 = vector.broadcast %cst_29 : f32 to vector<8x32xf32>
      %c0_30 = arith.constant 0 : index
      %c0_31 = arith.constant 0 : index
      %29 = vector.load %arg13[%c0_30, %c0_31] : memref<8x32xf32, #tpu.memory_space<vmem>>, vector<8x32xf32>
      tpu.vector_store %arg13[%c0_30, %c0_31], %28 {strides = array<i32>} : memref<8x32xf32, #tpu.memory_space<vmem>>, vector<8x32xf32>,
      %cst_32 = arith.constant 0.000000e+00 : f32
      %30 = vector.broadcast %cst_32 : f32 to vector<8x1024xf32>
      %c0_33 = arith.constant 0 : index
      %c0_34 = arith.constant 0 : index
      %31 = vector.load %arg14[%c0_33, %c0_34] : memref<8x1024xf32, #tpu.memory_space<vmem>>, vector<8x1024xf32>
      tpu.vector_store %arg14[%c0_33, %c0_34], %30 {strides = array<i32>} : memref<8x1024xf32, #tpu.memory_space<vmem>>, vector<8x1024xf32>,
    } else {
    }
    %c0 = arith.constant 0 : index
    %c0_1 = arith.constant 0 : index
    %3 = vector.load %arg2[%c0, %c0_1] : memref<8x32xf32, #tpu.memory_space<vmem>>, vector<8x32xf32>
    %c0_2 = arith.constant 0 : index
    %c0_3 = arith.constant 0 : index
    %4 = vector.load %arg3[%c0_2, %c0_3] : memref<8x8xf32, #tpu.memory_space<vmem>>, vector<8x8xf32>
    %c0_4 = arith.constant 0 : index
    %c0_5 = arith.constant 0 : index
    %5 = vector.load %arg12[%c0_4, %c0_5] : memref<8x1xf32, #tpu.memory_space<vmem>>, vector<8x1xf32>
    %cst = arith.constant dense<0.000000e+00> : vector<8xf32>
    %6 = vector.multi_reduction <add>, %4, %cst [1] : vector<8x8xf32> to vector<8xf32>
    %7 = vector.shape_cast %6 : vector<8xf32> to vector<8x1xf32>
    %8 = arith.addf %5, %7 : vector<8x1xf32>
    %c0_6 = arith.constant 0 : index
    %c0_7 = arith.constant 0 : index
    %9 = vector.load %arg12[%c0_6, %c0_7] : memref<8x1xf32, #tpu.memory_space<vmem>>, vector<8x1xf32>
    tpu.vector_store %arg12[%c0_6, %c0_7], %8 {strides = array<i32>} : memref<8x1xf32, #tpu.memory_space<vmem>>, vector<8x1xf32>,
    %c0_8 = arith.constant 0 : index
    %c0_9 = arith.constant 0 : index
    %10 = vector.load %arg13[%c0_8, %c0_9] : memref<8x32xf32, #tpu.memory_space<vmem>>, vector<8x32xf32>
    %cst_10 = arith.constant dense<0.000000e+00> : vector<8x32xf32>
    %11 = tpu.matmul %4, %3, %cst_10 {dimension_numbers = #tpu.dot_dimension_numbers<[1], [0], [0], [1], [0, 0, 1, 1], [], []>} : vector<8x8xf32>, vector<8x32xf32>, vector<8x32xf32> -> vector<8x32xf32>
    %12 = arith.addf %10, %11 : vector<8x32xf32>
    %c0_11 = arith.constant 0 : index
    %c0_12 = arith.constant 0 : index
    %13 = vector.load %arg13[%c0_11, %c0_12] : memref<8x32xf32, #tpu.memory_space<vmem>>, vector<8x32xf32>
    tpu.vector_store %arg13[%c0_11, %c0_12], %12 {strides = array<i32>} : memref<8x32xf32, #tpu.memory_space<vmem>>, vector<8x32xf32>,
    %c0_13 = arith.constant 0 : index
    %c0_14 = arith.constant 0 : index
    %14 = vector.load %arg4[%c0_13, %c0_14] : memref<32x1024xf32, #tpu.memory_space<vmem>>, vector<32x1024xf32>
    %cst_15 = arith.constant dense<0.000000e+00> : vector<8x1024xf32>
    %15 = tpu.matmul %3, %14, %cst_15 {dimension_numbers = #tpu.dot_dimension_numbers<[1], [0], [0], [1], [0, 0, 1, 1], [], []>} : vector<8x32xf32>, vector<32x1024xf32>, vector<8x1024xf32> -> vector<8x1024xf32>
    %c0_16 = arith.constant 0 : index
    %c0_17 = arith.constant 0 : index
    %16 = vector.load %arg5[%c0_16, %c0_17] : memref<32x1024xf32, #tpu.memory_space<vmem>>, vector<32x1024xf32>
    %cst_18 = arith.constant dense<0.000000e+00> : vector<8x1024xf32>
    %17 = tpu.matmul %3, %16, %cst_18 {dimension_numbers = #tpu.dot_dimension_numbers<[1], [0], [0], [1], [0, 0, 1, 1], [], []>} : vector<8x32xf32>, vector<32x1024xf32>, vector<8x1024xf32> -> vector<8x1024xf32>
    %c0_19 = arith.constant 0 : index
    %c0_20 = arith.constant 0 : index
    %18 = vector.load %arg14[%c0_19, %c0_20] : memref<8x1024xf32, #tpu.memory_space<vmem>>, vector<8x1024xf32>
    %19 = arith.mulf %15, %17 : vector<8x1024xf32>
    %cst_21 = arith.constant dense<0.000000e+00> : vector<8x1024xf32>
    %20 = tpu.matmul %4, %19, %cst_21 {dimension_numbers = #tpu.dot_dimension_numbers<[1], [0], [0], [1], [0, 0, 1, 1], [], []>} : vector<8x8xf32>, vector<8x1024xf32>, vector<8x1024xf32> -> vector<8x1024xf32>
    %21 = arith.addf %18, %20 : vector<8x1024xf32>
    %c0_22 = arith.constant 0 : index
    %c0_23 = arith.constant 0 : index
    %22 = vector.load %arg14[%c0_22, %c0_23] : memref<8x1024xf32, #tpu.memory_space<vmem>>, vector<8x1024xf32>
    tpu.vector_store %arg14[%c0_22, %c0_23], %21 {strides = array<i32>} : memref<8x1024xf32, #tpu.memory_space<vmem>>, vector<8x1024xf32>,
    %c0_i32_24 = arith.constant 0 : i32
    %23 = arith.cmpi eq, %arg1, %c0_i32_24 : i32
    %24 = arith.extui %23 : i1 to i32
    %c0_i32_25 = arith.constant 0 : i32
    %25 = arith.cmpi ne, %24, %c0_i32_25 : i32
    scf.if %25 {
      %c0_26 = arith.constant 0 : index
      %c0_27 = arith.constant 0 : index
      %26 = vector.load %arg12[%c0_26, %c0_27] : memref<8x1xf32, #tpu.memory_space<vmem>>, vector<8x1xf32>
      %cst_28 = arith.constant 0.000000e+00 : f32
      %27 = vector.broadcast %cst_28 : f32 to vector<8x1xf32>
      %28 = arith.cmpf oeq, %26, %27 : vector<8x1xf32>
      %cst_29 = arith.constant 1.000000e+00 : f32
      %29 = vector.broadcast %cst_29 : f32 to vector<8x1xf32>
      %30 = arith.select %28, %29, %26 : vector<8x1xi1>, vector<8x1xf32>
      %c0_30 = arith.constant 0 : index
      %c0_31 = arith.constant 0 : index
      %31 = vector.load %arg13[%c0_30, %c0_31] : memref<8x32xf32, #tpu.memory_space<vmem>>, vector<8x32xf32>
      %32 = vector.broadcast %30 : vector<8x1xf32> to vector<8x32xf32>
      %33 = arith.divf %31, %32 : vector<8x32xf32>
      %c0_32 = arith.constant 0 : index
      %c0_33 = arith.constant 0 : index
      %34 = vector.load %arg4[%c0_32, %c0_33] : memref<32x1024xf32, #tpu.memory_space<vmem>>, vector<32x1024xf32>
      %cst_34 = arith.constant dense<0.000000e+00> : vector<8x1024xf32>
      %35 = tpu.matmul %33, %34, %cst_34 {dimension_numbers = #tpu.dot_dimension_numbers<[1], [0], [0], [1], [0, 0, 1, 1], [], []>} : vector<8x32xf32>, vector<32x1024xf32>, vector<8x1024xf32> -> vector<8x1024xf32>
      %c0_35 = arith.constant 0 : index
      %c0_36 = arith.constant 0 : index
      %36 = vector.load %arg5[%c0_35, %c0_36] : memref<32x1024xf32, #tpu.memory_space<vmem>>, vector<32x1024xf32>
      %cst_37 = arith.constant dense<0.000000e+00> : vector<8x1024xf32>
      %37 = tpu.matmul %33, %36, %cst_37 {dimension_numbers = #tpu.dot_dimension_numbers<[1], [0], [0], [1], [0, 0, 1, 1], [], []>} : vector<8x32xf32>, vector<32x1024xf32>, vector<8x1024xf32> -> vector<8x1024xf32>
      %c0_38 = arith.constant 0 : index
      %c0_39 = arith.constant 0 : index
      %38 = vector.load %arg14[%c0_38, %c0_39] : memref<8x1024xf32, #tpu.memory_space<vmem>>, vector<8x1024xf32>
      %39 = vector.broadcast %30 : vector<8x1xf32> to vector<8x1024xf32>
      %40 = arith.divf %38, %39 : vector<8x1024xf32>
      %41 = arith.mulf %35, %37 : vector<8x1024xf32>
      %42 = arith.subf %40, %41 : vector<8x1024xf32>
      %c0_40 = arith.constant 0 : index
      %c0_41 = arith.constant 0 : index
      %43 = vector.load %arg8[%c0_40, %c0_41] : memref<8x1xf32, #tpu.memory_space<vmem>>, vector<8x1xf32>
      %44 = arith.addf %26, %43 : vector<8x1xf32>
      %cst_42 = arith.constant 0.000000e+00 : f32
      %45 = vector.broadcast %cst_42 : f32 to vector<8x1xf32>
      %46 = arith.cmpf oeq, %44, %45 : vector<8x1xf32>
      %cst_43 = arith.constant 0.000000e+00 : f32
      %47 = vector.broadcast %cst_43 : f32 to vector<8x1xf32>
      %48 = arith.cmpf oeq, %44, %47 : vector<8x1xf32>
      %cst_44 = arith.constant 1.000000e+00 : f32
      %49 = vector.broadcast %cst_44 : f32 to vector<8x1xf32>
      %50 = arith.select %48, %49, %44 : vector<8x1xi1>, vector<8x1xf32>
      %51 = arith.divf %26, %50 : vector<8x1xf32>
      %cst_45 = arith.constant 0.000000e+00 : f32
      %52 = vector.broadcast %cst_45 : f32 to vector<8x1xf32>
      %53 = arith.select %46, %52, %51 : vector<8x1xi1>, vector<8x1xf32>
      %c0_46 = arith.constant 0 : index
      %c0_47 = arith.constant 0 : index
      %54 = vector.load %arg7[%c0_46, %c0_47] : memref<8x32xf32, #tpu.memory_space<vmem>>, vector<8x32xf32>
      %55 = arith.subf %54, %33 : vector<8x32xf32>
      %c0_48 = arith.constant 0 : index
      %c0_49 = arith.constant 0 : index
      %56 = vector.load %arg4[%c0_48, %c0_49] : memref<32x1024xf32, #tpu.memory_space<vmem>>, vector<32x1024xf32>
      %cst_50 = arith.constant dense<0.000000e+00> : vector<8x1024xf32>
      %57 = tpu.matmul %55, %56, %cst_50 {dimension_numbers = #tpu.dot_dimension_numbers<[1], [0], [0], [1], [0, 0, 1, 1], [], []>} : vector<8x32xf32>, vector<32x1024xf32>, vector<8x1024xf32> -> vector<8x1024xf32>
      %c0_51 = arith.constant 0 : index
      %c0_52 = arith.constant 0 : index
      %58 = vector.load %arg5[%c0_51, %c0_52] : memref<32x1024xf32, #tpu.memory_space<vmem>>, vector<32x1024xf32>
      %cst_53 = arith.constant dense<0.000000e+00> : vector<8x1024xf32>
      %59 = tpu.matmul %55, %58, %cst_53 {dimension_numbers = #tpu.dot_dimension_numbers<[1], [0], [0], [1], [0, 0, 1, 1], [], []>} : vector<8x32xf32>, vector<32x1024xf32>, vector<8x1024xf32> -> vector<8x1024xf32>
      %c0_54 = arith.constant 0 : index
      %c0_55 = arith.constant 0 : index
      %60 = vector.load %arg6[%c0_54, %c0_55] : memref<8x1024xf32, #tpu.memory_space<vmem>>, vector<8x1024xf32>
      %cst_56 = arith.constant 1.000000e+00 : f32
      %61 = vector.broadcast %cst_56 : f32 to vector<8x1xf32>
      %62 = arith.subf %61, %53 : vector<8x1xf32>
      %63 = vector.broadcast %62 : vector<8x1xf32> to vector<8x1024xf32>
      %64 = arith.mulf %60, %63 : vector<8x1024xf32>
      %65 = vector.broadcast %53 : vector<8x1xf32> to vector<8x1024xf32>
      %66 = arith.mulf %42, %65 : vector<8x1024xf32>
      %67 = arith.addf %64, %66 : vector<8x1024xf32>
      %cst_57 = arith.constant 1.000000e+00 : f32
      %68 = vector.broadcast %cst_57 : f32 to vector<8x1xf32>
      %69 = arith.subf %68, %53 : vector<8x1xf32>
      %70 = arith.mulf %53, %69 : vector<8x1xf32>
      %71 = arith.mulf %57, %59 : vector<8x1024xf32>
      %72 = vector.broadcast %70 : vector<8x1xf32> to vector<8x1024xf32>
      %73 = arith.mulf %72, %71 : vector<8x1024xf32>
      %74 = arith.addf %67, %73 : vector<8x1024xf32>
      %c0_58 = arith.constant 0 : index
      %c0_59 = arith.constant 0 : index
      %75 = vector.load %arg9[%c0_58, %c0_59] : memref<8x1024xf32, #tpu.memory_space<vmem>>, vector<8x1024xf32>
      tpu.vector_store %arg9[%c0_58, %c0_59], %74 {strides = array<i32>} : memref<8x1024xf32, #tpu.memory_space<vmem>>, vector<8x1024xf32>,
      %c0_60 = arith.constant 0 : index
      %c0_61 = arith.constant 0 : index
      %76 = vector.load %arg7[%c0_60, %c0_61] : memref<8x32xf32, #tpu.memory_space<vmem>>, vector<8x32xf32>
      %cst_62 = arith.constant 1.000000e+00 : f32
      %77 = vector.broadcast %cst_62 : f32 to vector<8x1xf32>
      %78 = arith.subf %77, %53 : vector<8x1xf32>
      %79 = vector.broadcast %78 : vector<8x1xf32> to vector<8x32xf32>
      %80 = arith.mulf %76, %79 : vector<8x32xf32>
      %81 = vector.broadcast %53 : vector<8x1xf32> to vector<8x32xf32>
      %82 = arith.mulf %33, %81 : vector<8x32xf32>
      %83 = arith.addf %80, %82 : vector<8x32xf32>
      %c0_63 = arith.constant 0 : index
      %c0_64 = arith.constant 0 : index
      %84 = vector.load %arg10[%c0_63, %c0_64] : memref<8x32xf32, #tpu.memory_space<vmem>>, vector<8x32xf32>
      tpu.vector_store %arg10[%c0_63, %c0_64], %83 {strides = array<i32>} : memref<8x32xf32, #tpu.memory_space<vmem>>, vector<8x32xf32>,
      %85 = arith.addf %43, %26 : vector<8x1xf32>
      %c0_65 = arith.constant 0 : index
      %c0_66 = arith.constant 0 : index
      %86 = vector.load %arg11[%c0_65, %c0_66] : memref<8x1xf32, #tpu.memory_space<vmem>>, vector<8x1xf32>
      tpu.vector_store %arg11[%c0_65, %c0_66], %85 {strides = array<i32>} : memref<8x1xf32, #tpu.memory_space<vmem>>, vector<8x1xf32>,
    } else {
    }
    return
  }
  func.func @transform_0(%arg0: i32, %arg1: i32) -> (i32, i32) {
    %c0_i32 = arith.constant 0 : i32
    %c0_i32_0 = arith.constant 0 : i32
    return %arg1, %c0_i32 : i32, i32
  }
  func.func @transform_1(%arg0: i32, %arg1: i32) -> (i32, i32) {
    %c0_i32 = arith.constant 0 : i32
    return %arg0, %arg1 : i32, i32
  }
  func.func @transform_2(%arg0: i32, %arg1: i32) -> (i32, i32) {
    %c0_i32 = arith.constant 0 : i32
    %c0_i32_0 = arith.constant 0 : i32
    %c0_i32_1 = arith.constant 0 : i32
    return %c0_i32, %c0_i32_0 : i32, i32
  }
  func.func @transform_3(%arg0: i32, %arg1: i32) -> (i32, i32) {
    %c0_i32 = arith.constant 0 : i32
    %c0_i32_0 = arith.constant 0 : i32
    %c0_i32_1 = arith.constant 0 : i32
    return %c0_i32, %c0_i32_0 : i32, i32
  }
  func.func @transform_4(%arg0: i32, %arg1: i32) -> (i32, i32) {
    %c0_i32 = arith.constant 0 : i32
    %c0_i32_0 = arith.constant 0 : i32
    return %arg0, %c0_i32 : i32, i32
  }
  func.func @transform_5(%arg0: i32, %arg1: i32) -> (i32, i32) {
    %c0_i32 = arith.constant 0 : i32
    %c0_i32_0 = arith.constant 0 : i32
    return %arg0, %c0_i32 : i32, i32
  }
  func.func @transform_6(%arg0: i32, %arg1: i32) -> (i32, i32) {
    %c0_i32 = arith.constant 0 : i32
    %c0_i32_0 = arith.constant 0 : i32
    return %arg0, %c0_i32 : i32, i32
  }
  func.func @transform_7(%arg0: i32, %arg1: i32) -> (i32, i32) {
    %c0_i32 = arith.constant 0 : i32
    %c0_i32_0 = arith.constant 0 : i32
    return %arg0, %c0_i32 : i32, i32
  }
  func.func @transform_8(%arg0: i32, %arg1: i32) -> (i32, i32) {
    %c0_i32 = arith.constant 0 : i32
    %c0_i32_0 = arith.constant 0 : i32
    return %arg0, %c0_i32 : i32, i32
  }
  func.func @transform_9(%arg0: i32, %arg1: i32) -> (i32, i32) {
    %c0_i32 = arith.constant 0 : i32
    %c0_i32_0 = arith.constant 0 : i32
    return %arg0, %c0_i32 : i32, i32
  }
}

</mosaic_0001>

<llo_original>
// kernel: tpu_custom_call.1
$region0: #{tpu_custom_call.1}
  #allocation0 [shape = 'u32[]', space=smem, size = 0x4, offset = 0x4, fixed_abs, tag = 'smem constant byte address 0x4 - core index']
  #allocation1 [shape = 'u32[72,128]{1,0:T(1,128)}', space=vmem, size = 0x9000, scoped, tag = 'internal scratch']
  #allocation2 [shape = 'f32[8,1]{1,0:T(8,128)}', space=vmem, size = 0x1000, scoped, tag = 'scratch operand']
  #allocation3 [shape = 'f32[8,32]{1,0:T(8,128)}', space=vmem, size = 0x1000, scoped, tag = 'scratch operand']
  #allocation4 [shape = 'f32[8,1024]{1,0:T(8,128)}', space=vmem, size = 0x8000, scoped, tag = 'scratch operand']
  %s0 = inlined_call_operand.vmem [shape: f32[8,32], index: 0, kind: input, shape index: {}]
  %s1 = inlined_call_operand.hbm [shape: f32[8,8], index: 1, kind: input, shape index: {}]
  %s2 = inlined_call_operand.hbm [shape: f32[32,1024], index: 2, kind: input, shape index: {}]
  %s3 = inlined_call_operand.hbm [shape: f32[32,1024], index: 3, kind: input, shape index: {}]
  %s4 = inlined_call_operand.hbm [shape: f32[8,1024], index: 4, kind: input, shape index: {}]
  %s5 = inlined_call_operand.hbm [shape: f32[8,32], index: 5, kind: input, shape index: {}]
  %s6 = inlined_call_operand.vmem [shape: f32[8,1], index: 6, kind: input, shape index: {}]
  %s7 = inlined_call_operand.hbm [shape: f32[8,1024], index: 7, kind: output, shape index: {0}]
  %s8 = inlined_call_operand.hbm [shape: f32[8,32], index: 8, kind: output, shape index: {1}]
  %s9 = inlined_call_operand.vmem [shape: f32[8,1], index: 9, kind: output, shape index: {2}]
  %10 = xla_tuple %s7, %s8, %s9
  %s11 = sld [smem:[#allocation0]]
  $region82: #{tpu_custom_call.1} parent=0
    _
  %s13 = ssub.s32 1, %s11
  %s14 = scalar_select 0, %s13, %s11
  $region1: #{tpu_custom_call.1} parent=0
    #allocation5 [shape = 'u8[4096]{0}', space=vmem, size = 0x1000, scoped, tag = 'input window, operand 1, single buffered']
    #allocation6 [shape = 's32[1]{0}', space=sflag, size = 0x4, scoped, tag = 'scoped memory for tpu_custom_call.1']
    #allocation7 [shape = 's32[1]{0}', space=sflag, size = 0x4, scoped, tag = 'scoped memory for tpu_custom_call.1']
    #allocation8 [shape = 'u8[131072]{0}', space=vmem, size = 0x20000, scoped, tag = 'input window, operand 2, single buffered']
    #allocation9 [shape = 's32[1]{0}', space=sflag, size = 0x4, scoped, tag = 'scoped memory for tpu_custom_call.1']
    #allocation10 [shape = 'u8[131072]{0}', space=vmem, size = 0x20000, scoped, tag = 'input window, operand 3, single buffered']
    #allocation11 [shape = 'u8[32768]{0}', space=vmem, size = 0x8000, scoped, tag = 'input window, operand 4, single buffered']
    #allocation12 [shape = 's32[1]{0}', space=sflag, size = 0x4, scoped, tag = 'scoped memory for tpu_custom_call.1']
    #allocation13 [shape = 'u8[4096]{0}', space=vmem, size = 0x1000, scoped, tag = 'input window, operand 5, single buffered']
    #allocation14 [shape = 'u8[32768]{0}', space=vmem, size = 0x8000, scoped, tag = 'output window, operand 0, single buffered']
    #allocation15 [shape = 'u8[4096]{0}', space=vmem, size = 0x1000, scoped, tag = 'output window, operand 1, single buffered']
    #allocation16 [shape = 's32[1]{0}', space=sflag, size = 0x4, scoped, tag = 'scoped memory for tpu_custom_call.1']
    %15 = vsyncpa [#allocation6], 0
    %16 = vsyncpa [#allocation9], 0
    %17 = vsyncpa [#allocation12], 0
    %18 = vsyncpa [#allocation7], 0
    %19 = vsyncpa [#allocation16], 0
    // Predicated region
    $region2: #{tpu_custom_call.1} parent=1 // pred_check
      _
    $region3: #{tpu_custom_call.1} parent=1 // pred_check_branch
      %21 = sbr.rel (0) target = $region5
    $region4: #{tpu_custom_call.1} parent=1 // pred_region
      _
    $region5: #{tpu_custom_call.1} parent=1 // pred_fallthru
      _
    // Predicated region
    $region6: #{tpu_custom_call.1} parent=1 // pred_check
      _
    $region7: #{tpu_custom_call.1} parent=1 // pred_check_branch
      %23 = sbr.rel (0) target = $region9
    $region8: #{tpu_custom_call.1} parent=1 // pred_region
      %25 = vsyncadd [#allocation6], 0
      %s27 = sshll.u32 %s1, 4
      %s28 = int_to_ptr.hbm [resolvable:$true] %s27
      %s29 = sshll.u32 [#allocation5], 4
      %s30 = int_to_ptr.vmem [resolvable:$true] %s29
      %32 = dma.hbm_to_vmem [thread:$0]  %s28, 128, %s30, [#allocation6]
    $region9: #{tpu_custom_call.1} parent=1 // pred_fallthru
      _
    // Predicated region
    $region10: #{tpu_custom_call.1} parent=1 // pred_check
      _
    $region11: #{tpu_custom_call.1} parent=1 // pred_check_branch
      %34 = sbr.rel (0) target = $region13
    $region12: #{tpu_custom_call.1} parent=1 // pred_region
      %36 = vsyncadd [#allocation9], 0
      %s37 = sshll.u32 %s2, 4
      %s38 = int_to_ptr.hbm [resolvable:$true] %s37
      %s39 = sshll.u32 [#allocation8], 4
      %s40 = int_to_ptr.vmem [resolvable:$true] %s39
      %45 = dma.hbm_to_vmem [thread:$0]  %s38, 4096, %s40, [#allocation9], 1024, 1024, 64
    $region13: #{tpu_custom_call.1} parent=1 // pred_fallthru
      _
    // Predicated region
    $region14: #{tpu_custom_call.1} parent=1 // pred_check
      _
    $region15: #{tpu_custom_call.1} parent=1 // pred_check_branch
      %47 = sbr.rel (0) target = $region17
    $region16: #{tpu_custom_call.1} parent=1 // pred_region
      %49 = vsyncadd [#allocation9], 0
      %s50 = sshll.u32 %s3, 4
      %s51 = int_to_ptr.hbm [resolvable:$true] %s50
      %s52 = sshll.u32 [#allocation10], 4
      %s53 = int_to_ptr.vmem [resolvable:$true] %s52
      %58 = dma.hbm_to_vmem [thread:$0]  %s51, 4096, %s53, [#allocation9], 1024, 1024, 64
    $region17: #{tpu_custom_call.1} parent=1 // pred_fallthru
      _
    // Predicated region
    $region18: #{tpu_custom_call.1} parent=1 // pred_check
      _
    $region19: #{tpu_custom_call.1} parent=1 // pred_check_branch
      %60 = sbr.rel (0) target = $region21
    $region20: #{tpu_custom_call.1} parent=1 // pred_region
      %62 = vsyncadd [#allocation12], 0
      %s64 = sshll.u32 %s4, 4
      %s65 = int_to_ptr.hbm [resolvable:$true] %s64
      %s66 = sshll.u32 [#allocation11], 4
      %s67 = int_to_ptr.vmem [resolvable:$true] %s66
      %69 = dma.hbm_to_vmem [thread:$0]  %s65, 1024, %s67, [#allocation12]
    $region21: #{tpu_custom_call.1} parent=1 // pred_fallthru
      _
    // Predicated region
    $region22: #{tpu_custom_call.1} parent=1 // pred_check
      _
    $region23: #{tpu_custom_call.1} parent=1 // pred_check_branch
      %71 = sbr.rel (0) target = $region25
    $region24: #{tpu_custom_call.1} parent=1 // pred_region
      %73 = vsyncadd [#allocation12], 0
      %s75 = sshll.u32 %s5, 4
      %s76 = int_to_ptr.hbm [resolvable:$true] %s75
      %s77 = sshll.u32 [#allocation13], 4
      %s78 = int_to_ptr.vmem [resolvable:$true] %s77
      %80 = dma.hbm_to_vmem [thread:$0]  %s76, 128, %s78, [#allocation12]
    $region25: #{tpu_custom_call.1} parent=1 // pred_fallthru
      _
    // Predicated region
    $region26: #{tpu_custom_call.1} parent=1 // pred_check
      _
    $region27: #{tpu_custom_call.1} parent=1 // pred_check_branch
      %82 = sbr.rel (0) target = $region29
    $region28: #{tpu_custom_call.1} parent=1 // pred_region
      _
    $region29: #{tpu_custom_call.1} parent=1 // pred_fallthru
      _
    // Predicated region
    $region30: #{tpu_custom_call.1} parent=1 // pred_check
      _
    $region31: #{tpu_custom_call.1} parent=1 // pred_check_branch
      %84 = sbr.rel (0) target = $region33
    $region32: #{tpu_custom_call.1} parent=1 // pred_region
      %86 = dma.done [#allocation6], 128
    $region33: #{tpu_custom_call.1} parent=1 // pred_fallthru
      _
    // Predicated region
    $region34: #{tpu_custom_call.1} parent=1 // pred_check
      _
    $region35: #{tpu_custom_call.1} parent=1 // pred_check_branch
      %88 = sbr.rel (0) target = $region37
    $region36: #{tpu_custom_call.1} parent=1 // pred_region
      %90 = dma.done [#allocation9], 4096
    $region37: #{tpu_custom_call.1} parent=1 // pred_fallthru
      _
    // Predicated region
    $region38: #{tpu_custom_call.1} parent=1 // pred_check
      _
    $region39: #{tpu_custom_call.1} parent=1 // pred_check_branch
      %92 = sbr.rel (0) target = $region41
    $region40: #{tpu_custom_call.1} parent=1 // pred_region
      %94 = dma.done [#allocation9], 4096
    $region41: #{tpu_custom_call.1} parent=1 // pred_fallthru
      _
    // Predicated region
    $region42: #{tpu_custom_call.1} parent=1 // pred_check
      _
    $region43: #{tpu_custom_call.1} parent=1 // pred_check_branch
      %96 = sbr.rel (0) target = $region45
    $region44: #{tpu_custom_call.1} parent=1 // pred_region
      %98 = dma.done [#allocation12], 1024
    $region45: #{tpu_custom_call.1} parent=1 // pred_fallthru
      _
    // Predicated region
    $region46: #{tpu_custom_call.1} parent=1 // pred_check
      _
    $region47: #{tpu_custom_call.1} parent=1 // pred_check_branch
      %100 = sbr.rel (0) target = $region49
    $region48: #{tpu_custom_call.1} parent=1 // pred_region
      %102 = dma.done [#allocation12], 128
    $region49: #{tpu_custom_call.1} parent=1 // pred_fallthru
      _
    %p103 = scmp.eq.s32.totalorder 0, 0
    // Predicated region
    $region50: #{tpu_custom_call.1} parent=1 // pred_check
      %p104 = pneg %p103
    $region51: #{tpu_custom_call.1} parent=1 // pred_check_branch
      %106 = sbr.rel (%p104) target = $region53
    $region52: #{tpu_custom_call.1} parent=1 // pred_region
      %vm107 = vcmask 7168
      %108 = vst.msk [vmem:[#allocation2] sm:$0xff] %vm107, 0.0
      %vm109 = vcmask 261120
      %110 = vst.msk [vmem:[#allocation3] sm:$0xff] %vm109, 0.0
      %111 = vst [vmem:[#allocation4] sm:$0xff] 0.0
      %112 = vst [vmem:[#allocation4 + $0x8] sm:$0xff] 0.0
      %113 = vst [vmem:[#allocation4 + $0x10] sm:$0xff] 0.0
      %114 = vst [vmem:[#allocation4 + $0x18] sm:$0xff] 0.0
      %115 = vst [vmem:[#allocation4 + $0x20] sm:$0xff] 0.0
      %116 = vst [vmem:[#allocation4 + $0x28] sm:$0xff] 0.0
      %117 = vst [vmem:[#allocation4 + $0x30] sm:$0xff] 0.0
      %118 = vst [vmem:[#allocation4 + $0x38] sm:$0xff] 0.0
    $region53: #{tpu_custom_call.1} parent=1 // pred_fallthru
      _
    %v119 = vld [vmem:[%s0] sm:$0xff]
    %v120 = vld [vmem:[#allocation5] sm:$0xff]
    %v121 = vld [vmem:[#allocation2] sm:$0xff]
    %vm122 = vcmask 64512
    %v123 = vsel %vm122, %v120, 0.0
    %124 = vadd.xlane.f32.xlu0 %v123
    %v125 = vpop.xlane.xlu0 %124
    %v126 = vadd.f32 %v121, %v125
    %vm127 = vcmask 7168
    %128 = vst.msk [vmem:[#allocation2] sm:$0xff] %vm127, %v126
    %v129 = vld [vmem:[#allocation3] sm:$0xff]
    %v131 = vsel %vm122, %v120, 0
    %133 = vmatpush.msra.mxu0 0.0
    %134 = vmatpush.msra.mxu0 0.0
    %135 = vmatpush.msra.mxu0 0.0
    %136 = vmatpush.msra.mxu0 0.0
    %137 = vmatpush.msra.mxu0 0.0
    %138 = vmatpush.msra.mxu0 0.0
    %139 = vmatpush.msra.mxu0 0.0
    %140 = vmatpush.msra.mxu0 0.0
    %141 = vmatpush.msra.mxu0 0.0
    %142 = vmatpush.msra.mxu0 0.0
    %143 = vmatpush.msra.mxu0 0.0
    %144 = vmatpush.msra.mxu0 0.0
    %145 = vmatpush.msra.mxu0 0.0
    %146 = vmatpush.msra.mxu0 0.0
    %147 = vmatpush.msra.mxu0 0.0
    %148 = vmatpush.msra.mxu0 %v119
    %149 = vmatmul.f32.gmra.mxu0 %v131
    %v150 = vpop.f32.mrf.mxu0
    %v151 = vadd.f32 0.0, %v150
    %152 = vdwg.mxu0
    %v153 = vadd.f32 %v129, %v151
    %vm154 = vcmask 261120
    %155 = vst.msk [vmem:[#allocation3] sm:$0xff] %vm154, %v153
    %v156 = vld [vmem:[#allocation8] sm:$0xff]
    %v157 = vld [vmem:[#allocation8 + $0x8] sm:$0xff]
    %v158 = vld [vmem:[#allocation8 + $0x10] sm:$0xff]
    %v159 = vld [vmem:[#allocation8 + $0x18] sm:$0xff]
    %v160 = vld [vmem:[#allocation8 + $0x20] sm:$0xff]
    %v161 = vld [vmem:[#allocation8 + $0x28] sm:$0xff]
    %v162 = vld [vmem:[#allocation8 + $0x30] sm:$0xff]
    %v163 = vld [vmem:[#allocation8 + $0x38] sm:$0xff]
    %v164 = vld [vmem:[#allocation8 + $0x40] sm:$0xff]
    %v165 = vld [vmem:[#allocation8 + $0x48] sm:$0xff]
    %v166 = vld [vmem:[#allocation8 + $0x50] sm:$0xff]
    %v167 = vld [vmem:[#allocation8 + $0x58] sm:$0xff]
    %v168 = vld [vmem:[#allocation8 + $0x60] sm:$0xff]
    %v169 = vld [vmem:[#allocation8 + $0x68] sm:$0xff]
    %v170 = vld [vmem:[#allocation8 + $0x70] sm:$0xff]
    %v171 = vld [vmem:[#allocation8 + $0x78] sm:$0xff]
    %v172 = vld [vmem:[#allocation8 + $0x80] sm:$0xff]
    %v173 = vld [vmem:[#allocation8 + $0x88] sm:$0xff]
    %v174 = vld [vmem:[#allocation8 + $0x90] sm:$0xff]
    %v175 = vld [vmem:[#allocation8 + $0x98] sm:$0xff]
    %v176 = vld [vmem:[#allocation8 + $0xa0] sm:$0xff]
    %v177 = vld [vmem:[#allocation8 + $0xa8] sm:$0xff]
    %v178 = vld [vmem:[#allocation8 + $0xb0] sm:$0xff]
    %v179 = vld [vmem:[#allocation8 + $0xb8] sm:$0xff]
    %v180 = vld [vmem:[#allocation8 + $0xc0] sm:$0xff]
    %v181 = vld [vmem:[#allocation8 + $0xc8] sm:$0xff]
    %v182 = vld [vmem:[#allocation8 + $0xd0] sm:$0xff]
    %v183 = vld [vmem:[#allocation8 + $0xd8] sm:$0xff]
    %v184 = vld [vmem:[#allocation8 + $0xe0] sm:$0xff]
    %v185 = vld [vmem:[#allocation8 + $0xe8] sm:$0xff]
    %v186 = vld [vmem:[#allocation8 + $0xf0] sm:$0xff]
    %v187 = vld [vmem:[#allocation8 + $0xf8] sm:$0xff]
    %v189 = vsel %vm154, %v119, 0
    %191 = vmatpush.msra.mxu0 0.0
    %192 = vmatpush.msra.mxu0 0.0
    %193 = vmatpush.msra.mxu0 0.0
    %194 = vmatpush.msra.mxu0 0.0
    %195 = vmatpush.msra.mxu0 0.0
    %196 = vmatpush.msra.mxu0 0.0
    %197 = vmatpush.msra.mxu0 0.0
    %198 = vmatpush.msra.mxu0 0.0
    %199 = vmatpush.msra.mxu0 0.0
    %200 = vmatpush.msra.mxu0 0.0
    %201 = vmatpush.msra.mxu0 0.0
    %202 = vmatpush.msra.mxu0 0.0
    %203 = vmatpush.msra.mxu0 %v180
    %204 = vmatpush.msra.mxu0 %v172
    %205 = vmatpush.msra.mxu0 %v164
    %206 = vmatpush.msra.mxu0 %v156
    %207 = vmatmul.f32.gmra.mxu0 %v189
    %v208 = vpop.f32.mrf.mxu0
    %v209 = vadd.f32 0.0, %v208
    %210 = vdwg.mxu0
    %211 = vmatpush.msra.mxu0 0.0
    %212 = vmatpush.msra.mxu0 0.0
    %213 = vmatpush.msra.mxu0 0.0
    %214 = vmatpush.msra.mxu0 0.0
    %215 = vmatpush.msra.mxu0 0.0
    %216 = vmatpush.msra.mxu0 0.0
    %217 = vmatpush.msra.mxu0 0.0
    %218 = vmatpush.msra.mxu0 0.0
    %219 = vmatpush.msra.mxu0 0.0
    %220 = vmatpush.msra.mxu0 0.0
    %221 = vmatpush.msra.mxu0 0.0
    %222 = vmatpush.msra.mxu0 0.0
    %223 = vmatpush.msra.mxu0 %v181
    %224 = vmatpush.msra.mxu0 %v173
    %225 = vmatpush.msra.mxu0 %v165
    %226 = vmatpush.msra.mxu0 %v157
    %227 = vmatmul.f32.gmra.mxu0 %v189
    %v228 = vpop.f32.mrf.mxu0
    %v229 = vadd.f32 0.0, %v228
    %230 = vdwg.mxu0
    %231 = vmatpush.msra.mxu0 0.0
    %232 = vmatpush.msra.mxu0 0.0
    %233 = vmatpush.msra.mxu0 0.0
    %234 = vmatpush.msra.mxu0 0.0
    %235 = vmatpush.msra.mxu0 0.0
    %236 = vmatpush.msra.mxu0 0.0
    %237 = vmatpush.msra.mxu0 0.0
    %238 = vmatpush.msra.mxu0 0.0
    %239 = vmatpush.msra.mxu0 0.0
    %240 = vmatpush.msra.mxu0 0.0
    %241 = vmatpush.msra.mxu0 0.0
    %242 = vmatpush.msra.mxu0 0.0
    %243 = vmatpush.msra.mxu0 %v182
    %244 = vmatpush.msra.mxu0 %v174
    %245 = vmatpush.msra.mxu0 %v166
    %246 = vmatpush.msra.mxu0 %v158
    %247 = vmatmul.f32.gmra.mxu0 %v189
    %v248 = vpop.f32.mrf.mxu0
    %v249 = vadd.f32 0.0, %v248
    %250 = vdwg.mxu0
    %251 = vmatpush.msra.mxu0 0.0
    %252 = vmatpush.msra.mxu0 0.0
    %253 = vmatpush.msra.mxu0 0.0
    %254 = vmatpush.msra.mxu0 0.0
    %255 = vmatpush.msra.mxu0 0.0
    %256 = vmatpush.msra.mxu0 0.0
    %257 = vmatpush.msra.mxu0 0.0
    %258 = vmatpush.msra.mxu0 0.0
    %259 = vmatpush.msra.mxu0 0.0
    %260 = vmatpush.msra.mxu0 0.0
    %261 = vmatpush.msra.mxu0 0.0
    %262 = vmatpush.msra.mxu0 0.0
    %263 = vmatpush.msra.mxu0 %v183
    %264 = vmatpush.msra.mxu0 %v175
    %265 = vmatpush.msra.mxu0 %v167
    %266 = vmatpush.msra.mxu0 %v159
    %267 = vmatmul.f32.gmra.mxu0 %v189
    %v268 = vpop.f32.mrf.mxu0
    %v269 = vadd.f32 0.0, %v268
    %270 = vdwg.mxu0
    %271 = vmatpush.msra.mxu0 0.0
    %272 = vmatpush.msra.mxu0 0.0
    %273 = vmatpush.msra.mxu0 0.0
    %274 = vmatpush.msra.mxu0 0.0
    %275 = vmatpush.msra.mxu0 0.0
    %276 = vmatpush.msra.mxu0 0.0
    %277 = vmatpush.msra.mxu0 0.0
    %278 = vmatpush.msra.mxu0 0.0
    %279 = vmatpush.msra.mxu0 0.0
    %280 = vmatpush.msra.mxu0 0.0
    %281 = vmatpush.msra.mxu0 0.0
    %282 = vmatpush.msra.mxu0 0.0
    %283 = vmatpush.msra.mxu0 %v184
    %284 = vmatpush.msra.mxu0 %v176
    %285 = vmatpush.msra.mxu0 %v168
    %286 = vmatpush.msra.mxu0 %v160
    %287 = vmatmul.f32.gmra.mxu0 %v189
    %v288 = vpop.f32.mrf.mxu0
    %v289 = vadd.f32 0.0, %v288
    %290 = vdwg.mxu0
    %291 = vmatpush.msra.mxu0 0.0
    %292 = vmatpush.msra.mxu0 0.0
    %293 = vmatpush.msra.mxu0 0.0
    %294 = vmatpush.msra.mxu0 0.0
    %295 = vmatpush.msra.mxu0 0.0
    %296 = vmatpush.msra.mxu0 0.0
    %297 = vmatpush.msra.mxu0 0.0
    %298 = vmatpush.msra.mxu0 0.0
    %299 = vmatpush.msra.mxu0 0.0
    %300 = vmatpush.msra.mxu0 0.0
    %301 = vmatpush.msra.mxu0 0.0
    %302 = vmatpush.msra.mxu0 0.0
    %303 = vmatpush.msra.mxu0 %v185
    %304 = vmatpush.msra.mxu0 %v177
    %305 = vmatpush.msra.mxu0 %v169
    %306 = vmatpush.msra.mxu0 %v161
    %307 = vmatmul.f32.gmra.mxu0 %v189
    %v308 = vpop.f32.mrf.mxu0
    %v309 = vadd.f32 0.0, %v308
    %310 = vdwg.mxu0
    %311 = vmatpush.msra.mxu0 0.0
    %312 = vmatpush.msra.mxu0 0.0
    %313 = vmatpush.msra.mxu0 0.0
    %314 = vmatpush.msra.mxu0 0.0
    %315 = vmatpush.msra.mxu0 0.0
    %316 = vmatpush.msra.mxu0 0.0
    %317 = vmatpush.msra.mxu0 0.0
    %318 = vmatpush.msra.mxu0 0.0
    %319 = vmatpush.msra.mxu0 0.0
    %320 = vmatpush.msra.mxu0 0.0
    %321 = vmatpush.msra.mxu0 0.0
    %322 = vmatpush.msra.mxu0 0.0
    %323 = vmatpush.msra.mxu0 %v186
    %324 = vmatpush.msra.mxu0 %v178
    %325 = vmatpush.msra.mxu0 %v170
    %326 = vmatpush.msra.mxu0 %v162
    %327 = vmatmul.f32.gmra.mxu0 %v189
    %v328 = vpop.f32.mrf.mxu0
    %v329 = vadd.f32 0.0, %v328
    %330 = vdwg.mxu0
    %331 = vmatpush.msra.mxu0 0.0
    %332 = vmatpush.msra.mxu0 0.0
    %333 = vmatpush.msra.mxu0 0.0
    %334 = vmatpush.msra.mxu0 0.0
    %335 = vmatpush.msra.mxu0 0.0
    %336 = vmatpush.msra.mxu0 0.0
    %337 = vmatpush.msra.mxu0 0.0
    %338 = vmatpush.msra.mxu0 0.0
    %339 = vmatpush.msra.mxu0 0.0
    %340 = vmatpush.msra.mxu0 0.0
    %341 = vmatpush.msra.mxu0 0.0
    %342 = vmatpush.msra.mxu0 0.0
    %343 = vmatpush.msra.mxu0 %v187
    %344 = vmatpush.msra.mxu0 %v179
    %345 = vmatpush.msra.mxu0 %v171
    %346 = vmatpush.msra.mxu0 %v163
    %347 = vmatmul.f32.gmra.mxu0 %v189
    %v348 = vpop.f32.mrf.mxu0
    %v349 = vadd.f32 0.0, %v348
    %350 = vdwg.mxu0
    %v351 = vld [vmem:[#allocation10] sm:$0xff]
    %v352 = vld [vmem:[#allocation10 + $0x8] sm:$0xff]
    %v353 = vld [vmem:[#allocation10 + $0x10] sm:$0xff]
    %v354 = vld [vmem:[#allocation10 + $0x18] sm:$0xff]
    %v355 = vld [vmem:[#allocation10 + $0x20] sm:$0xff]
    %v356 = vld [vmem:[#allocation10 + $0x28] sm:$0xff]
    %v357 = vld [vmem:[#allocation10 + $0x30] sm:$0xff]
    %v358 = vld [vmem:[#allocation10 + $0x38] sm:$0xff]
    %v359 = vld [vmem:[#allocation10 + $0x40] sm:$0xff]
    %v360 = vld [vmem:[#allocation10 + $0x48] sm:$0xff]
    %v361 = vld [vmem:[#allocation10 + $0x50] sm:$0xff]
    %v362 = vld [vmem:[#allocation10 + $0x58] sm:$0xff]
    %v363 = vld [vmem:[#allocation10 + $0x60] sm:$0xff]
    %v364 = vld [vmem:[#allocation10 + $0x68] sm:$0xff]
    %v365 = vld [vmem:[#allocation10 + $0x70] sm:$0xff]
    %v366 = vld [vmem:[#allocation10 + $0x78] sm:$0xff]
    %v367 = vld [vmem:[#allocation10 + $0x80] sm:$0xff]
    %v368 = vld [vmem:[#allocation10 + $0x88] sm:$0xff]
    %v369 = vld [vmem:[#allocation10 + $0x90] sm:$0xff]
    %v370 = vld [vmem:[#allocation10 + $0x98] sm:$0xff]
    %v371 = vld [vmem:[#allocation10 + $0xa0] sm:$0xff]
    %v372 = vld [vmem:[#allocation10 + $0xa8] sm:$0xff]
    %v373 = vld [vmem:[#allocation10 + $0xb0] sm:$0xff]
    %v374 = vld [vmem:[#allocation10 + $0xb8] sm:$0xff]
    %v375 = vld [vmem:[#allocation10 + $0xc0] sm:$0xff]
    %v376 = vld [vmem:[#allocation10 + $0xc8] sm:$0xff]
    %v377 = vld [vmem:[#allocation10 + $0xd0] sm:$0xff]
    %v378 = vld [vmem:[#allocation10 + $0xd8] sm:$0xff]
    %v379 = vld [vmem:[#allocation10 + $0xe0] sm:$0xff]
    %v380 = vld [vmem:[#allocation10 + $0xe8] sm:$0xff]
    %v381 = vld [vmem:[#allocation10 + $0xf0] sm:$0xff]
    %v382 = vld [vmem:[#allocation10 + $0xf8] sm:$0xff]
    %383 = vmatpush.msra.mxu0 0.0
    %384 = vmatpush.msra.mxu0 0.0
    %385 = vmatpush.msra.mxu0 0.0
    %386 = vmatpush.msra.mxu0 0.0
    %387 = vmatpush.msra.mxu0 0.0
    %388 = vmatpush.msra.mxu0 0.0
    %389 = vmatpush.msra.mxu0 0.0
    %390 = vmatpush.msra.mxu0 0.0
    %391 = vmatpush.msra.mxu0 0.0
    %392 = vmatpush.msra.mxu0 0.0
    %393 = vmatpush.msra.mxu0 0.0
    %394 = vmatpush.msra.mxu0 0.0
    %395 = vmatpush.msra.mxu0 %v375
    %396 = vmatpush.msra.mxu0 %v367
    %397 = vmatpush.msra.mxu0 %v359
    %398 = vmatpush.msra.mxu0 %v351
    %399 = vmatmul.f32.gmra.mxu0 %v189
    %v400 = vpop.f32.mrf.mxu0
    %v401 = vadd.f32 0.0, %v400
    %402 = vdwg.mxu0
    %403 = vmatpush.msra.mxu0 0.0
    %404 = vmatpush.msra.mxu0 0.0
    %405 = vmatpush.msra.mxu0 0.0
    %406 = vmatpush.msra.mxu0 0.0
    %407 = vmatpush.msra.mxu0 0.0
    %408 = vmatpush.msra.mxu0 0.0
    %409 = vmatpush.msra.mxu0 0.0
    %410 = vmatpush.msra.mxu0 0.0
    %411 = vmatpush.msra.mxu0 0.0
    %412 = vmatpush.msra.mxu0 0.0
    %413 = vmatpush.msra.mxu0 0.0
    %414 = vmatpush.msra.mxu0 0.0
    %415 = vmatpush.msra.mxu0 %v376
    %416 = vmatpush.msra.mxu0 %v368
    %417 = vmatpush.msra.mxu0 %v360
    %418 = vmatpush.msra.mxu0 %v352
    %419 = vmatmul.f32.gmra.mxu0 %v189
    %v420 = vpop.f32.mrf.mxu0
    %v421 = vadd.f32 0.0, %v420
    %422 = vdwg.mxu0
    %423 = vmatpush.msra.mxu0 0.0
    %424 = vmatpush.msra.mxu0 0.0
    %425 = vmatpush.msra.mxu0 0.0
    %426 = vmatpush.msra.mxu0 0.0
    %427 = vmatpush.msra.mxu0 0.0
    %428 = vmatpush.msra.mxu0 0.0
    %429 = vmatpush.msra.mxu0 0.0
    %430 = vmatpush.msra.mxu0 0.0
    %431 = vmatpush.msra.mxu0 0.0
    %432 = vmatpush.msra.mxu0 0.0
    %433 = vmatpush.msra.mxu0 0.0
    %434 = vmatpush.msra.mxu0 0.0
    %435 = vmatpush.msra.mxu0 %v377
    %436 = vmatpush.msra.mxu0 %v369
    %437 = vmatpush.msra.mxu0 %v361
    %438 = vmatpush.msra.mxu0 %v353
    %439 = vmatmul.f32.gmra.mxu0 %v189
    %v440 = vpop.f32.mrf.mxu0
    %v441 = vadd.f32 0.0, %v440
    %442 = vdwg.mxu0
    %443 = vmatpush.msra.mxu0 0.0
    %444 = vmatpush.msra.mxu0 0.0
    %445 = vmatpush.msra.mxu0 0.0
    %446 = vmatpush.msra.mxu0 0.0
    %447 = vmatpush.msra.mxu0 0.0
    %448 = vmatpush.msra.mxu0 0.0
    %449 = vmatpush.msra.mxu0 0.0
    %450 = vmatpush.msra.mxu0 0.0
    %451 = vmatpush.msra.mxu0 0.0
    %452 = vmatpush.msra.mxu0 0.0
    %453 = vmatpush.msra.mxu0 0.0
    %454 = vmatpush.msra.mxu0 0.0
    %455 = vmatpush.msra.mxu0 %v378
    %456 = vmatpush.msra.mxu0 %v370
    %457 = vmatpush.msra.mxu0 %v362
    %458 = vmatpush.msra.mxu0 %v354
    %459 = vmatmul.f32.gmra.mxu0 %v189
    %v460 = vpop.f32.mrf.mxu0
    %v461 = vadd.f32 0.0, %v460
    %462 = vdwg.mxu0
    %463 = vmatpush.msra.mxu0 0.0
    %464 = vmatpush.msra.mxu0 0.0
    %465 = vmatpush.msra.mxu0 0.0
    %466 = vmatpush.msra.mxu0 0.0
    %467 = vmatpush.msra.mxu0 0.0
    %468 = vmatpush.msra.mxu0 0.0
    %469 = vmatpush.msra.mxu0 0.0
    %470 = vmatpush.msra.mxu0 0.0
    %471 = vmatpush.msra.mxu0 0.0
    %472 = vmatpush.msra.mxu0 0.0
    %473 = vmatpush.msra.mxu0 0.0
    %474 = vmatpush.msra.mxu0 0.0
    %475 = vmatpush.msra.mxu0 %v379
    %476 = vmatpush.msra.mxu0 %v371
    %477 = vmatpush.msra.mxu0 %v363
    %478 = vmatpush.msra.mxu0 %v355
    %479 = vmatmul.f32.gmra.mxu0 %v189
    %v480 = vpop.f32.mrf.mxu0
    %v481 = vadd.f32 0.0, %v480
    %482 = vdwg.mxu0
    %483 = vmatpush.msra.mxu0 0.0
    %484 = vmatpush.msra.mxu0 0.0
    %485 = vmatpush.msra.mxu0 0.0
    %486 = vmatpush.msra.mxu0 0.0
    %487 = vmatpush.msra.mxu0 0.0
    %488 = vmatpush.msra.mxu0 0.0
    %489 = vmatpush.msra.mxu0 0.0
    %490 = vmatpush.msra.mxu0 0.0
    %491 = vmatpush.msra.mxu0 0.0
    %492 = vmatpush.msra.mxu0 0.0
    %493 = vmatpush.msra.mxu0 0.0
    %494 = vmatpush.msra.mxu0 0.0
    %495 = vmatpush.msra.mxu0 %v380
    %496 = vmatpush.msra.mxu0 %v372
    %497 = vmatpush.msra.mxu0 %v364
    %498 = vmatpush.msra.mxu0 %v356
    %499 = vmatmul.f32.gmra.mxu0 %v189
    %v500 = vpop.f32.mrf.mxu0
    %v501 = vadd.f32 0.0, %v500
    %502 = vdwg.mxu0
    %503 = vmatpush.msra.mxu0 0.0
    %504 = vmatpush.msra.mxu0 0.0
    %505 = vmatpush.msra.mxu0 0.0
    %506 = vmatpush.msra.mxu0 0.0
    %507 = vmatpush.msra.mxu0 0.0
    %508 = vmatpush.msra.mxu0 0.0
    %509 = vmatpush.msra.mxu0 0.0
    %510 = vmatpush.msra.mxu0 0.0
    %511 = vmatpush.msra.mxu0 0.0
    %512 = vmatpush.msra.mxu0 0.0
    %513 = vmatpush.msra.mxu0 0.0
    %514 = vmatpush.msra.mxu0 0.0
    %515 = vmatpush.msra.mxu0 %v381
    %516 = vmatpush.msra.mxu0 %v373
    %517 = vmatpush.msra.mxu0 %v365
    %518 = vmatpush.msra.mxu0 %v357
    %519 = vmatmul.f32.gmra.mxu0 %v189
    %v520 = vpop.f32.mrf.mxu0
    %v521 = vadd.f32 0.0, %v520
    %522 = vdwg.mxu0
    %523 = vmatpush.msra.mxu0 0.0
    %524 = vmatpush.msra.mxu0 0.0
    %525 = vmatpush.msra.mxu0 0.0
    %526 = vmatpush.msra.mxu0 0.0
    %527 = vmatpush.msra.mxu0 0.0
    %528 = vmatpush.msra.mxu0 0.0
    %529 = vmatpush.msra.mxu0 0.0
    %530 = vmatpush.msra.mxu0 0.0
    %531 = vmatpush.msra.mxu0 0.0
    %532 = vmatpush.msra.mxu0 0.0
    %533 = vmatpush.msra.mxu0 0.0
    %534 = vmatpush.msra.mxu0 0.0
    %535 = vmatpush.msra.mxu0 %v382
    %536 = vmatpush.msra.mxu0 %v374
    %537 = vmatpush.msra.mxu0 %v366
    %538 = vmatpush.msra.mxu0 %v358
    %539 = vmatmul.f32.gmra.mxu0 %v189
    %v540 = vpop.f32.mrf.mxu0
    %v541 = vadd.f32 0.0, %v540
    %542 = vdwg.mxu0
    %v543 = vld [vmem:[#allocation4] sm:$0xff]
    %v544 = vld [vmem:[#allocation4 + $0x8] sm:$0xff]
    %v545 = vld [vmem:[#allocation4 + $0x10] sm:$0xff]
    %v546 = vld [vmem:[#allocation4 + $0x18] sm:$0xff]
    %v547 = vld [vmem:[#allocation4 + $0x20] sm:$0xff]
    %v548 = vld [vmem:[#allocation4 + $0x28] sm:$0xff]
    %v549 = vld [vmem:[#allocation4 + $0x30] sm:$0xff]
    %v550 = vld [vmem:[#allocation4 + $0x38] sm:$0xff]
    %v551 = vmul.f32 %v209, %v401
    %v552 = vmul.f32 %v229, %v421
    %v553 = vmul.f32 %v249, %v441
    %v554 = vmul.f32 %v269, %v461
    %v555 = vmul.f32 %v289, %v481
    %v556 = vmul.f32 %v309, %v501
    %v557 = vmul.f32 %v329, %v521
    %v558 = vmul.f32 %v349, %v541
    %559 = vmatpush.msra.mxu0 0.0
    %560 = vmatpush.msra.mxu0 0.0
    %561 = vmatpush.msra.mxu0 0.0
    %562 = vmatpush.msra.mxu0 0.0
    %563 = vmatpush.msra.mxu0 0.0
    %564 = vmatpush.msra.mxu0 0.0
    %565 = vmatpush.msra.mxu0 0.0
    %566 = vmatpush.msra.mxu0 0.0
    %567 = vmatpush.msra.mxu0 0.0
    %568 = vmatpush.msra.mxu0 0.0
    %569 = vmatpush.msra.mxu0 0.0
    %570 = vmatpush.msra.mxu0 0.0
    %571 = vmatpush.msra.mxu0 0.0
    %572 = vmatpush.msra.mxu0 0.0
    %573 = vmatpush.msra.mxu0 0.0
    %574 = vmatpush.msra.mxu0 %v551
    %575 = vmatmul.f32.gmra.mxu0 %v131
    %v576 = vpop.f32.mrf.mxu0
    %v577 = vadd.f32 0.0, %v576
    %578 = vdwg.mxu0
    %579 = vmatpush.msra.mxu0 0.0
    %580 = vmatpush.msra.mxu0 0.0
    %581 = vmatpush.msra.mxu0 0.0
    %582 = vmatpush.msra.mxu0 0.0
    %583 = vmatpush.msra.mxu0 0.0
    %584 = vmatpush.msra.mxu0 0.0
    %585 = vmatpush.msra.mxu0 0.0
    %586 = vmatpush.msra.mxu0 0.0
    %587 = vmatpush.msra.mxu0 0.0
    %588 = vmatpush.msra.mxu0 0.0
    %589 = vmatpush.msra.mxu0 0.0
    %590 = vmatpush.msra.mxu0 0.0
    %591 = vmatpush.msra.mxu0 0.0
    %592 = vmatpush.msra.mxu0 0.0
    %593 = vmatpush.msra.mxu0 0.0
    %594 = vmatpush.msra.mxu0 %v552
    %595 = vmatmul.f32.gmra.mxu0 %v131
    %v596 = vpop.f32.mrf.mxu0
    %v597 = vadd.f32 0.0, %v596
    %598 = vdwg.mxu0
    %599 = vmatpush.msra.mxu0 0.0
    %600 = vmatpush.msra.mxu0 0.0
    %601 = vmatpush.msra.mxu0 0.0
    %602 = vmatpush.msra.mxu0 0.0
    %603 = vmatpush.msra.mxu0 0.0
    %604 = vmatpush.msra.mxu0 0.0
    %605 = vmatpush.msra.mxu0 0.0
    %606 = vmatpush.msra.mxu0 0.0
    %607 = vmatpush.msra.mxu0 0.0
    %608 = vmatpush.msra.mxu0 0.0
    %609 = vmatpush.msra.mxu0 0.0
    %610 = vmatpush.msra.mxu0 0.0
    %611 = vmatpush.msra.mxu0 0.0
    %612 = vmatpush.msra.mxu0 0.0
    %613 = vmatpush.msra.mxu0 0.0
    %614 = vmatpush.msra.mxu0 %v553
    %615 = vmatmul.f32.gmra.mxu0 %v131
    %v616 = vpop.f32.mrf.mxu0
    %v617 = vadd.f32 0.0, %v616
    %618 = vdwg.mxu0
    %619 = vmatpush.msra.mxu0 0.0
    %620 = vmatpush.msra.mxu0 0.0
    %621 = vmatpush.msra.mxu0 0.0
    %622 = vmatpush.msra.mxu0 0.0
    %623 = vmatpush.msra.mxu0 0.0
    %624 = vmatpush.msra.mxu0 0.0
    %625 = vmatpush.msra.mxu0 0.0
    %626 = vmatpush.msra.mxu0 0.0
    %627 = vmatpush.msra.mxu0 0.0
    %628 = vmatpush.msra.mxu0 0.0
    %629 = vmatpush.msra.mxu0 0.0
    %630 = vmatpush.msra.mxu0 0.0
    %631 = vmatpush.msra.mxu0 0.0
    %632 = vmatpush.msra.mxu0 0.0
    %633 = vmatpush.msra.mxu0 0.0
    %634 = vmatpush.msra.mxu0 %v554
    %635 = vmatmul.f32.gmra.mxu0 %v131
    %v636 = vpop.f32.mrf.mxu0
    %v637 = vadd.f32 0.0, %v636
    %638 = vdwg.mxu0
    %639 = vmatpush.msra.mxu0 0.0
    %640 = vmatpush.msra.mxu0 0.0
    %641 = vmatpush.msra.mxu0 0.0
    %642 = vmatpush.msra.mxu0 0.0
    %643 = vmatpush.msra.mxu0 0.0
    %644 = vmatpush.msra.mxu0 0.0
    %645 = vmatpush.msra.mxu0 0.0
    %646 = vmatpush.msra.mxu0 0.0
    %647 = vmatpush.msra.mxu0 0.0
    %648 = vmatpush.msra.mxu0 0.0
    %649 = vmatpush.msra.mxu0 0.0
    %650 = vmatpush.msra.mxu0 0.0
    %651 = vmatpush.msra.mxu0 0.0
    %652 = vmatpush.msra.mxu0 0.0
    %653 = vmatpush.msra.mxu0 0.0
    %654 = vmatpush.msra.mxu0 %v555
    %655 = vmatmul.f32.gmra.mxu0 %v131
    %v656 = vpop.f32.mrf.mxu0
    %v657 = vadd.f32 0.0, %v656
    %658 = vdwg.mxu0
    %659 = vmatpush.msra.mxu0 0.0
    %660 = vmatpush.msra.mxu0 0.0
    %661 = vmatpush.msra.mxu0 0.0
    %662 = vmatpush.msra.mxu0 0.0
    %663 = vmatpush.msra.mxu0 0.0
    %664 = vmatpush.msra.mxu0 0.0
    %665 = vmatpush.msra.mxu0 0.0
    %666 = vmatpush.msra.mxu0 0.0
    %667 = vmatpush.msra.mxu0 0.0
    %668 = vmatpush.msra.mxu0 0.0
    %669 = vmatpush.msra.mxu0 0.0
    %670 = vmatpush.msra.mxu0 0.0
    %671 = vmatpush.msra.mxu0 0.0
    %672 = vmatpush.msra.mxu0 0.0
    %673 = vmatpush.msra.mxu0 0.0
    %674 = vmatpush.msra.mxu0 %v556
    %675 = vmatmul.f32.gmra.mxu0 %v131
    %v676 = vpop.f32.mrf.mxu0
    %v677 = vadd.f32 0.0, %v676
    %678 = vdwg.mxu0
    %679 = vmatpush.msra.mxu0 0.0
    %680 = vmatpush.msra.mxu0 0.0
    %681 = vmatpush.msra.mxu0 0.0
    %682 = vmatpush.msra.mxu0 0.0
    %683 = vmatpush.msra.mxu0 0.0
    %684 = vmatpush.msra.mxu0 0.0
    %685 = vmatpush.msra.mxu0 0.0
    %686 = vmatpush.msra.mxu0 0.0
    %687 = vmatpush.msra.mxu0 0.0
    %688 = vmatpush.msra.mxu0 0.0
    %689 = vmatpush.msra.mxu0 0.0
    %690 = vmatpush.msra.mxu0 0.0
    %691 = vmatpush.msra.mxu0 0.0
    %692 = vmatpush.msra.mxu0 0.0
    %693 = vmatpush.msra.mxu0 0.0
    %694 = vmatpush.msra.mxu0 %v557
    %695 = vmatmul.f32.gmra.mxu0 %v131
    %v696 = vpop.f32.mrf.mxu0
    %v697 = vadd.f32 0.0, %v696
    %698 = vdwg.mxu0
    %699 = vmatpush.msra.mxu0 0.0
    %700 = vmatpush.msra.mxu0 0.0
    %701 = vmatpush.msra.mxu0 0.0
    %702 = vmatpush.msra.mxu0 0.0
    %703 = vmatpush.msra.mxu0 0.0
    %704 = vmatpush.msra.mxu0 0.0
    %705 = vmatpush.msra.mxu0 0.0
    %706 = vmatpush.msra.mxu0 0.0
    %707 = vmatpush.msra.mxu0 0.0
    %708 = vmatpush.msra.mxu0 0.0
    %709 = vmatpush.msra.mxu0 0.0
    %710 = vmatpush.msra.mxu0 0.0
    %711 = vmatpush.msra.mxu0 0.0
    %712 = vmatpush.msra.mxu0 0.0
    %713 = vmatpush.msra.mxu0 0.0
    %714 = vmatpush.msra.mxu0 %v558
    %715 = vmatmul.f32.gmra.mxu0 %v131
    %v716 = vpop.f32.mrf.mxu0
    %v717 = vadd.f32 0.0, %v716
    %718 = vdwg.mxu0
    %v719 = vadd.f32 %v543, %v577
    %v720 = vadd.f32 %v544, %v597
    %v721 = vadd.f32 %v545, %v617
    %v722 = vadd.f32 %v546, %v637
    %v723 = vadd.f32 %v547, %v657
    %v724 = vadd.f32 %v548, %v677
    %v725 = vadd.f32 %v549, %v697
    %v726 = vadd.f32 %v550, %v717
    %727 = vst [vmem:[#allocation4] sm:$0xff] %v719
    %728 = vst [vmem:[#allocation4 + $0x8] sm:$0xff] %v720
    %729 = vst [vmem:[#allocation4 + $0x10] sm:$0xff] %v721
    %730 = vst [vmem:[#allocation4 + $0x18] sm:$0xff] %v722
    %731 = vst [vmem:[#allocation4 + $0x20] sm:$0xff] %v723
    %732 = vst [vmem:[#allocation4 + $0x28] sm:$0xff] %v724
    %733 = vst [vmem:[#allocation4 + $0x30] sm:$0xff] %v725
    %734 = vst [vmem:[#allocation4 + $0x38] sm:$0xff] %v726
    // Predicated region
    $region54: #{tpu_custom_call.1} parent=1 // pred_check
      %p735 = pneg %p103
    $region55: #{tpu_custom_call.1} parent=1 // pred_check_branch
      %737 = sbr.rel (%p735) target = $region57
    $region56: #{tpu_custom_call.1} parent=1 // pred_region
      %v738 = vld [vmem:[#allocation2] sm:$0xff]
      %vm739 = vcmp.eq.f32.partialorder %v738, 0.0
      %v740 = vsel %vm739, 1.0, %v738
      %v741 = vld [vmem:[#allocation3] sm:$0xff]
      %743 = vset.pattern.permute.xlu0 0
      %744 = vperm.xlu0 %743, %v740
      %v745 = vpop.permute.xlu0 %744
      %v747 = vrcp.pop %v745
      %v748 = vmul.f32 %v745, %v747
      %v749 = vsub.f32 1.0, %v748
      %v750 = vmul.f32 %v747, %v749
      %v751 = vadd.f32 %v747, %v750
      %vm752 = vweird.f32 %v745
      %vm753 = vweird.f32 %v747
      %vm754 = vmor %vm752, %vm753
      %v755 = vsel %vm754, %v747, %v751
      %v756 = vand.u32 2147483647, %v745
      %vm757 = vcmp.eq.f32.partialorder %v756, 8.507059e+37
      %v758 = vand.u32 %v745, 2147483648
      %v759 = vor.u32 1.1754944e-38, %v758
      %v760 = vsel %vm757, %v759, %v755
      %v761 = vmul.f32 %v741, %v760
      %v762 = vld [vmem:[#allocation8] sm:$0xff]
      %v763 = vld [vmem:[#allocation8 + $0x8] sm:$0xff]
      %v764 = vld [vmem:[#allocation8 + $0x10] sm:$0xff]
      %v765 = vld [vmem:[#allocation8 + $0x18] sm:$0xff]
      %v766 = vld [vmem:[#allocation8 + $0x20] sm:$0xff]
      %v767 = vld [vmem:[#allocation8 + $0x28] sm:$0xff]
      %v768 = vld [vmem:[#allocation8 + $0x30] sm:$0xff]
      %v769 = vld [vmem:[#allocation8 + $0x38] sm:$0xff]
      %v770 = vld [vmem:[#allocation8 + $0x40] sm:$0xff]
      %v771 = vld [vmem:[#allocation8 + $0x48] sm:$0xff]
      %v772 = vld [vmem:[#allocation8 + $0x50] sm:$0xff]
      %v773 = vld [vmem:[#allocation8 + $0x58] sm:$0xff]
      %v774 = vld [vmem:[#allocation8 + $0x60] sm:$0xff]
      %v775 = vld [vmem:[#allocation8 + $0x68] sm:$0xff]
      %v776 = vld [vmem:[#allocation8 + $0x70] sm:$0xff]
      %v777 = vld [vmem:[#allocation8 + $0x78] sm:$0xff]
      %v778 = vld [vmem:[#allocation8 + $0x80] sm:$0xff]
      %v779 = vld [vmem:[#allocation8 + $0x88] sm:$0xff]
      %v780 = vld [vmem:[#allocation8 + $0x90] sm:$0xff]
      %v781 = vld [vmem:[#allocation8 + $0x98] sm:$0xff]
      %v782 = vld [vmem:[#allocation8 + $0xa0] sm:$0xff]
      %v783 = vld [vmem:[#allocation8 + $0xa8] sm:$0xff]
      %v784 = vld [vmem:[#allocation8 + $0xb0] sm:$0xff]
      %v785 = vld [vmem:[#allocation8 + $0xb8] sm:$0xff]
      %v786 = vld [vmem:[#allocation8 + $0xc0] sm:$0xff]
      %v787 = vld [vmem:[#allocation8 + $0xc8] sm:$0xff]
      %v788 = vld [vmem:[#allocation8 + $0xd0] sm:$0xff]
      %v789 = vld [vmem:[#allocation8 + $0xd8] sm:$0xff]
      %v790 = vld [vmem:[#allocation8 + $0xe0] sm:$0xff]
      %v791 = vld [vmem:[#allocation8 + $0xe8] sm:$0xff]
      %v792 = vld [vmem:[#allocation8 + $0xf0] sm:$0xff]
      %v793 = vld [vmem:[#allocation8 + $0xf8] sm:$0xff]
      %v795 = vsel %vm154, %v761, 0
      %797 = vmatpush.msra.mxu0 0.0
      %798 = vmatpush.msra.mxu0 0.0
      %799 = vmatpush.msra.mxu0 0.0
      %800 = vmatpush.msra.mxu0 0.0
      %801 = vmatpush.msra.mxu0 0.0
      %802 = vmatpush.msra.mxu0 0.0
      %803 = vmatpush.msra.mxu0 0.0
      %804 = vmatpush.msra.mxu0 0.0
      %805 = vmatpush.msra.mxu0 0.0
      %806 = vmatpush.msra.mxu0 0.0
      %807 = vmatpush.msra.mxu0 0.0
      %808 = vmatpush.msra.mxu0 0.0
      %809 = vmatpush.msra.mxu0 %v786
      %810 = vmatpush.msra.mxu0 %v778
      %811 = vmatpush.msra.mxu0 %v770
      %812 = vmatpush.msra.mxu0 %v762
      %813 = vmatmul.f32.gmra.mxu0 %v795
      %v814 = vpop.f32.mrf.mxu0
      %v815 = vadd.f32 0.0, %v814
      %816 = vdwg.mxu0
      %817 = vmatpush.msra.mxu0 0.0
      %818 = vmatpush.msra.mxu0 0.0
      %819 = vmatpush.msra.mxu0 0.0
      %820 = vmatpush.msra.mxu0 0.0
      %821 = vmatpush.msra.mxu0 0.0
      %822 = vmatpush.msra.mxu0 0.0
      %823 = vmatpush.msra.mxu0 0.0
      %824 = vmatpush.msra.mxu0 0.0
      %825 = vmatpush.msra.mxu0 0.0
      %826 = vmatpush.msra.mxu0 0.0
      %827 = vmatpush.msra.mxu0 0.0
      %828 = vmatpush.msra.mxu0 0.0
      %829 = vmatpush.msra.mxu0 %v787
      %830 = vmatpush.msra.mxu0 %v779
      %831 = vmatpush.msra.mxu0 %v771
      %832 = vmatpush.msra.mxu0 %v763
      %833 = vmatmul.f32.gmra.mxu0 %v795
      %v834 = vpop.f32.mrf.mxu0
      %v835 = vadd.f32 0.0, %v834
      %836 = vdwg.mxu0
      %837 = vmatpush.msra.mxu0 0.0
      %838 = vmatpush.msra.mxu0 0.0
      %839 = vmatpush.msra.mxu0 0.0
      %840 = vmatpush.msra.mxu0 0.0
      %841 = vmatpush.msra.mxu0 0.0
      %842 = vmatpush.msra.mxu0 0.0
      %843 = vmatpush.msra.mxu0 0.0
      %844 = vmatpush.msra.mxu0 0.0
      %845 = vmatpush.msra.mxu0 0.0
      %846 = vmatpush.msra.mxu0 0.0
      %847 = vmatpush.msra.mxu0 0.0
      %848 = vmatpush.msra.mxu0 0.0
      %849 = vmatpush.msra.mxu0 %v788
      %850 = vmatpush.msra.mxu0 %v780
      %851 = vmatpush.msra.mxu0 %v772
      %852 = vmatpush.msra.mxu0 %v764
      %853 = vmatmul.f32.gmra.mxu0 %v795
      %v854 = vpop.f32.mrf.mxu0
      %v855 = vadd.f32 0.0, %v854
      %856 = vdwg.mxu0
      %857 = vmatpush.msra.mxu0 0.0
      %858 = vmatpush.msra.mxu0 0.0
      %859 = vmatpush.msra.mxu0 0.0
      %860 = vmatpush.msra.mxu0 0.0
      %861 = vmatpush.msra.mxu0 0.0
      %862 = vmatpush.msra.mxu0 0.0
      %863 = vmatpush.msra.mxu0 0.0
      %864 = vmatpush.msra.mxu0 0.0
      %865 = vmatpush.msra.mxu0 0.0
      %866 = vmatpush.msra.mxu0 0.0
      %867 = vmatpush.msra.mxu0 0.0
      %868 = vmatpush.msra.mxu0 0.0
      %869 = vmatpush.msra.mxu0 %v789
      %870 = vmatpush.msra.mxu0 %v781
      %871 = vmatpush.msra.mxu0 %v773
      %872 = vmatpush.msra.mxu0 %v765
      %873 = vmatmul.f32.gmra.mxu0 %v795
      %v874 = vpop.f32.mrf.mxu0
      %v875 = vadd.f32 0.0, %v874
      %876 = vdwg.mxu0
      %877 = vmatpush.msra.mxu0 0.0
      %878 = vmatpush.msra.mxu0 0.0
      %879 = vmatpush.msra.mxu0 0.0
      %880 = vmatpush.msra.mxu0 0.0
      %881 = vmatpush.msra.mxu0 0.0
      %882 = vmatpush.msra.mxu0 0.0
      %883 = vmatpush.msra.mxu0 0.0
      %884 = vmatpush.msra.mxu0 0.0
      %885 = vmatpush.msra.mxu0 0.0
      %886 = vmatpush.msra.mxu0 0.0
      %887 = vmatpush.msra.mxu0 0.0
      %888 = vmatpush.msra.mxu0 0.0
      %889 = vmatpush.msra.mxu0 %v790
      %890 = vmatpush.msra.mxu0 %v782
      %891 = vmatpush.msra.mxu0 %v774
      %892 = vmatpush.msra.mxu0 %v766
      %893 = vmatmul.f32.gmra.mxu0 %v795
      %v894 = vpop.f32.mrf.mxu0
      %v895 = vadd.f32 0.0, %v894
      %896 = vdwg.mxu0
      %897 = vmatpush.msra.mxu0 0.0
      %898 = vmatpush.msra.mxu0 0.0
      %899 = vmatpush.msra.mxu0 0.0
      %900 = vmatpush.msra.mxu0 0.0
      %901 = vmatpush.msra.mxu0 0.0
      %902 = vmatpush.msra.mxu0 0.0
      %903 = vmatpush.msra.mxu0 0.0
      %904 = vmatpush.msra.mxu0 0.0
      %905 = vmatpush.msra.mxu0 0.0
      %906 = vmatpush.msra.mxu0 0.0
      %907 = vmatpush.msra.mxu0 0.0
      %908 = vmatpush.msra.mxu0 0.0
      %909 = vmatpush.msra.mxu0 %v791
      %910 = vmatpush.msra.mxu0 %v783
      %911 = vmatpush.msra.mxu0 %v775
      %912 = vmatpush.msra.mxu0 %v767
      %913 = vmatmul.f32.gmra.mxu0 %v795
      %v914 = vpop.f32.mrf.mxu0
      %v915 = vadd.f32 0.0, %v914
      %916 = vdwg.mxu0
      %917 = vmatpush.msra.mxu0 0.0
      %918 = vmatpush.msra.mxu0 0.0
      %919 = vmatpush.msra.mxu0 0.0
      %920 = vmatpush.msra.mxu0 0.0
      %921 = vmatpush.msra.mxu0 0.0
      %922 = vmatpush.msra.mxu0 0.0
      %923 = vmatpush.msra.mxu0 0.0
      %924 = vmatpush.msra.mxu0 0.0
      %925 = vmatpush.msra.mxu0 0.0
      %926 = vmatpush.msra.mxu0 0.0
      %927 = vmatpush.msra.mxu0 0.0
      %928 = vmatpush.msra.mxu0 0.0
      %929 = vmatpush.msra.mxu0 %v792
      %930 = vmatpush.msra.mxu0 %v784
      %931 = vmatpush.msra.mxu0 %v776
      %932 = vmatpush.msra.mxu0 %v768
      %933 = vmatmul.f32.gmra.mxu0 %v795
      %v934 = vpop.f32.mrf.mxu0
      %v935 = vadd.f32 0.0, %v934
      %936 = vdwg.mxu0
      %937 = vmatpush.msra.mxu0 0.0
      %938 = vmatpush.msra.mxu0 0.0
      %939 = vmatpush.msra.mxu0 0.0
      %940 = vmatpush.msra.mxu0 0.0
      %941 = vmatpush.msra.mxu0 0.0
      %942 = vmatpush.msra.mxu0 0.0
      %943 = vmatpush.msra.mxu0 0.0
      %944 = vmatpush.msra.mxu0 0.0
      %945 = vmatpush.msra.mxu0 0.0
      %946 = vmatpush.msra.mxu0 0.0
      %947 = vmatpush.msra.mxu0 0.0
      %948 = vmatpush.msra.mxu0 0.0
      %949 = vmatpush.msra.mxu0 %v793
      %950 = vmatpush.msra.mxu0 %v785
      %951 = vmatpush.msra.mxu0 %v777
      %952 = vmatpush.msra.mxu0 %v769
      %953 = vmatmul.f32.gmra.mxu0 %v795
      %v954 = vpop.f32.mrf.mxu0
      %v955 = vadd.f32 0.0, %v954
      %956 = vdwg.mxu0
      %v957 = vld [vmem:[#allocation10] sm:$0xff]
      %v958 = vld [vmem:[#allocation10 + $0x8] sm:$0xff]
      %v959 = vld [vmem:[#allocation10 + $0x10] sm:$0xff]
      %v960 = vld [vmem:[#allocation10 + $0x18] sm:$0xff]
      %v961 = vld [vmem:[#allocation10 + $0x20] sm:$0xff]
      %v962 = vld [vmem:[#allocation10 + $0x28] sm:$0xff]
      %v963 = vld [vmem:[#allocation10 + $0x30] sm:$0xff]
      %v964 = vld [vmem:[#allocation10 + $0x38] sm:$0xff]
      %v965 = vld [vmem:[#allocation10 + $0x40] sm:$0xff]
      %v966 = vld [vmem:[#allocation10 + $0x48] sm:$0xff]
      %v967 = vld [vmem:[#allocation10 + $0x50] sm:$0xff]
      %v968 = vld [vmem:[#allocation10 + $0x58] sm:$0xff]
      %v969 = vld [vmem:[#allocation10 + $0x60] sm:$0xff]
      %v970 = vld [vmem:[#allocation10 + $0x68] sm:$0xff]
      %v971 = vld [vmem:[#allocation10 + $0x70] sm:$0xff]
      %v972 = vld [vmem:[#allocation10 + $0x78] sm:$0xff]
      %v973 = vld [vmem:[#allocation10 + $0x80] sm:$0xff]
      %v974 = vld [vmem:[#allocation10 + $0x88] sm:$0xff]
      %v975 = vld [vmem:[#allocation10 + $0x90] sm:$0xff]
      %v976 = vld [vmem:[#allocation10 + $0x98] sm:$0xff]
      %v977 = vld [vmem:[#allocation10 + $0xa0] sm:$0xff]
      %v978 = vld [vmem:[#allocation10 + $0xa8] sm:$0xff]
      %v979 = vld [vmem:[#allocation10 + $0xb0] sm:$0xff]
      %v980 = vld [vmem:[#allocation10 + $0xb8] sm:$0xff]
      %v981 = vld [vmem:[#allocation10 + $0xc0] sm:$0xff]
      %v982 = vld [vmem:[#allocation10 + $0xc8] sm:$0xff]
      %v983 = vld [vmem:[#allocation10 + $0xd0] sm:$0xff]
      %v984 = vld [vmem:[#allocation10 + $0xd8] sm:$0xff]
      %v985 = vld [vmem:[#allocation10 + $0xe0] sm:$0xff]
      %v986 = vld [vmem:[#allocation10 + $0xe8] sm:$0xff]
      %v987 = vld [vmem:[#allocation10 + $0xf0] sm:$0xff]
      %v988 = vld [vmem:[#allocation10 + $0xf8] sm:$0xff]
      %989 = vmatpush.msra.mxu0 0.0
      %990 = vmatpush.msra.mxu0 0.0
      %991 = vmatpush.msra.mxu0 0.0
      %992 = vmatpush.msra.mxu0 0.0
      %993 = vmatpush.msra.mxu0 0.0
      %994 = vmatpush.msra.mxu0 0.0
      %995 = vmatpush.msra.mxu0 0.0
      %996 = vmatpush.msra.mxu0 0.0
      %997 = vmatpush.msra.mxu0 0.0
      %998 = vmatpush.msra.mxu0 0.0
      %999 = vmatpush.msra.mxu0 0.0
      %1000 = vmatpush.msra.mxu0 0.0
      %1001 = vmatpush.msra.mxu0 %v981
      %1002 = vmatpush.msra.mxu0 %v973
      %1003 = vmatpush.msra.mxu0 %v965
      %1004 = vmatpush.msra.mxu0 %v957
      %1005 = vmatmul.f32.gmra.mxu0 %v795
      %v1006 = vpop.f32.mrf.mxu0
      %v1007 = vadd.f32 0.0, %v1006
      %1008 = vdwg.mxu0
      %1009 = vmatpush.msra.mxu0 0.0
      %1010 = vmatpush.msra.mxu0 0.0
      %1011 = vmatpush.msra.mxu0 0.0
      %1012 = vmatpush.msra.mxu0 0.0
      %1013 = vmatpush.msra.mxu0 0.0
      %1014 = vmatpush.msra.mxu0 0.0
      %1015 = vmatpush.msra.mxu0 0.0
      %1016 = vmatpush.msra.mxu0 0.0
      %1017 = vmatpush.msra.mxu0 0.0
      %1018 = vmatpush.msra.mxu0 0.0
      %1019 = vmatpush.msra.mxu0 0.0
      %1020 = vmatpush.msra.mxu0 0.0
      %1021 = vmatpush.msra.mxu0 %v982
      %1022 = vmatpush.msra.mxu0 %v974
      %1023 = vmatpush.msra.mxu0 %v966
      %1024 = vmatpush.msra.mxu0 %v958
      %1025 = vmatmul.f32.gmra.mxu0 %v795
      %v1026 = vpop.f32.mrf.mxu0
      %v1027 = vadd.f32 0.0, %v1026
      %1028 = vdwg.mxu0
      %1029 = vmatpush.msra.mxu0 0.0
      %1030 = vmatpush.msra.mxu0 0.0
      %1031 = vmatpush.msra.mxu0 0.0
      %1032 = vmatpush.msra.mxu0 0.0
      %1033 = vmatpush.msra.mxu0 0.0
      %1034 = vmatpush.msra.mxu0 0.0
      %1035 = vmatpush.msra.mxu0 0.0
      %1036 = vmatpush.msra.mxu0 0.0
      %1037 = vmatpush.msra.mxu0 0.0
      %1038 = vmatpush.msra.mxu0 0.0
      %1039 = vmatpush.msra.mxu0 0.0
      %1040 = vmatpush.msra.mxu0 0.0
      %1041 = vmatpush.msra.mxu0 %v983
      %1042 = vmatpush.msra.mxu0 %v975
      %1043 = vmatpush.msra.mxu0 %v967
      %1044 = vmatpush.msra.mxu0 %v959
      %1045 = vmatmul.f32.gmra.mxu0 %v795
      %v1046 = vpop.f32.mrf.mxu0
      %v1047 = vadd.f32 0.0, %v1046
      %1048 = vdwg.mxu0
      %1049 = vmatpush.msra.mxu0 0.0
      %1050 = vmatpush.msra.mxu0 0.0
      %1051 = vmatpush.msra.mxu0 0.0
      %1052 = vmatpush.msra.mxu0 0.0
      %1053 = vmatpush.msra.mxu0 0.0
      %1054 = vmatpush.msra.mxu0 0.0
      %1055 = vmatpush.msra.mxu0 0.0
      %1056 = vmatpush.msra.mxu0 0.0
      %1057 = vmatpush.msra.mxu0 0.0
      %1058 = vmatpush.msra.mxu0 0.0
      %1059 = vmatpush.msra.mxu0 0.0
      %1060 = vmatpush.msra.mxu0 0.0
      %1061 = vmatpush.msra.mxu0 %v984
      %1062 = vmatpush.msra.mxu0 %v976
      %1063 = vmatpush.msra.mxu0 %v968
      %1064 = vmatpush.msra.mxu0 %v960
      %1065 = vmatmul.f32.gmra.mxu0 %v795
      %v1066 = vpop.f32.mrf.mxu0
      %v1067 = vadd.f32 0.0, %v1066
      %1068 = vdwg.mxu0
      %1069 = vmatpush.msra.mxu0 0.0
      %1070 = vmatpush.msra.mxu0 0.0
      %1071 = vmatpush.msra.mxu0 0.0
      %1072 = vmatpush.msra.mxu0 0.0
      %1073 = vmatpush.msra.mxu0 0.0
      %1074 = vmatpush.msra.mxu0 0.0
      %1075 = vmatpush.msra.mxu0 0.0
      %1076 = vmatpush.msra.mxu0 0.0
      %1077 = vmatpush.msra.mxu0 0.0
      %1078 = vmatpush.msra.mxu0 0.0
      %1079 = vmatpush.msra.mxu0 0.0
      %1080 = vmatpush.msra.mxu0 0.0
      %1081 = vmatpush.msra.mxu0 %v985
      %1082 = vmatpush.msra.mxu0 %v977
      %1083 = vmatpush.msra.mxu0 %v969
      %1084 = vmatpush.msra.mxu0 %v961
      %1085 = vmatmul.f32.gmra.mxu0 %v795
      %v1086 = vpop.f32.mrf.mxu0
      %v1087 = vadd.f32 0.0, %v1086
      %1088 = vdwg.mxu0
      %1089 = vmatpush.msra.mxu0 0.0
      %1090 = vmatpush.msra.mxu0 0.0
      %1091 = vmatpush.msra.mxu0 0.0
      %1092 = vmatpush.msra.mxu0 0.0
      %1093 = vmatpush.msra.mxu0 0.0
      %1094 = vmatpush.msra.mxu0 0.0
      %1095 = vmatpush.msra.mxu0 0.0
      %1096 = vmatpush.msra.mxu0 0.0
      %1097 = vmatpush.msra.mxu0 0.0
      %1098 = vmatpush.msra.mxu0 0.0
      %1099 = vmatpush.msra.mxu0 0.0
      %1100 = vmatpush.msra.mxu0 0.0
      %1101 = vmatpush.msra.mxu0 %v986
      %1102 = vmatpush.msra.mxu0 %v978
      %1103 = vmatpush.msra.mxu0 %v970
      %1104 = vmatpush.msra.mxu0 %v962
      %1105 = vmatmul.f32.gmra.mxu0 %v795
      %v1106 = vpop.f32.mrf.mxu0
      %v1107 = vadd.f32 0.0, %v1106
      %1108 = vdwg.mxu0
      %1109 = vmatpush.msra.mxu0 0.0
      %1110 = vmatpush.msra.mxu0 0.0
      %1111 = vmatpush.msra.mxu0 0.0
      %1112 = vmatpush.msra.mxu0 0.0
      %1113 = vmatpush.msra.mxu0 0.0
      %1114 = vmatpush.msra.mxu0 0.0
      %1115 = vmatpush.msra.mxu0 0.0
      %1116 = vmatpush.msra.mxu0 0.0
      %1117 = vmatpush.msra.mxu0 0.0
      %1118 = vmatpush.msra.mxu0 0.0
      %1119 = vmatpush.msra.mxu0 0.0
      %1120 = vmatpush.msra.mxu0 0.0
      %1121 = vmatpush.msra.mxu0 %v987
      %1122 = vmatpush.msra.mxu0 %v979
      %1123 = vmatpush.msra.mxu0 %v971
      %1124 = vmatpush.msra.mxu0 %v963
      %1125 = vmatmul.f32.gmra.mxu0 %v795
      %v1126 = vpop.f32.mrf.mxu0
      %v1127 = vadd.f32 0.0, %v1126
      %1128 = vdwg.mxu0
      %1129 = vmatpush.msra.mxu0 0.0
      %1130 = vmatpush.msra.mxu0 0.0
      %1131 = vmatpush.msra.mxu0 0.0
      %1132 = vmatpush.msra.mxu0 0.0
      %1133 = vmatpush.msra.mxu0 0.0
      %1134 = vmatpush.msra.mxu0 0.0
      %1135 = vmatpush.msra.mxu0 0.0
      %1136 = vmatpush.msra.mxu0 0.0
      %1137 = vmatpush.msra.mxu0 0.0
      %1138 = vmatpush.msra.mxu0 0.0
      %1139 = vmatpush.msra.mxu0 0.0
      %1140 = vmatpush.msra.mxu0 0.0
      %1141 = vmatpush.msra.mxu0 %v988
      %1142 = vmatpush.msra.mxu0 %v980
      %1143 = vmatpush.msra.mxu0 %v972
      %1144 = vmatpush.msra.mxu0 %v964
      %1145 = vmatmul.f32.gmra.mxu0 %v795
      %v1146 = vpop.f32.mrf.mxu0
      %v1147 = vadd.f32 0.0, %v1146
      %1148 = vdwg.mxu0
      %v1149 = vld [vmem:[#allocation4] sm:$0xff]
      %v1150 = vld [vmem:[#allocation4 + $0x8] sm:$0xff]
      %v1151 = vld [vmem:[#allocation4 + $0x10] sm:$0xff]
      %v1152 = vld [vmem:[#allocation4 + $0x18] sm:$0xff]
      %v1153 = vld [vmem:[#allocation4 + $0x20] sm:$0xff]
      %v1154 = vld [vmem:[#allocation4 + $0x28] sm:$0xff]
      %v1155 = vld [vmem:[#allocation4 + $0x30] sm:$0xff]
      %v1156 = vld [vmem:[#allocation4 + $0x38] sm:$0xff]
      %v1157 = vmul.f32 %v1149, %v760
      %v1158 = vmul.f32 %v1150, %v760
      %v1159 = vmul.f32 %v1151, %v760
      %v1160 = vmul.f32 %v1152, %v760
      %v1161 = vmul.f32 %v1153, %v760
      %v1162 = vmul.f32 %v1154, %v760
      %v1163 = vmul.f32 %v1155, %v760
      %v1164 = vmul.f32 %v1156, %v760
      %v1165 = vmul.f32 %v815, %v1007
      %v1166 = vmul.f32 %v835, %v1027
      %v1167 = vmul.f32 %v855, %v1047
      %v1168 = vmul.f32 %v875, %v1067
      %v1169 = vmul.f32 %v895, %v1087
      %v1170 = vmul.f32 %v915, %v1107
      %v1171 = vmul.f32 %v935, %v1127
      %v1172 = vmul.f32 %v955, %v1147
      %v1173 = vsub.f32 %v1157, %v1165
      %v1174 = vsub.f32 %v1158, %v1166
      %v1175 = vsub.f32 %v1159, %v1167
      %v1176 = vsub.f32 %v1160, %v1168
      %v1177 = vsub.f32 %v1161, %v1169
      %v1178 = vsub.f32 %v1162, %v1170
      %v1179 = vsub.f32 %v1163, %v1171
      %v1180 = vsub.f32 %v1164, %v1172
      %v1181 = vld [vmem:[%s6] sm:$0xff]
      %v1182 = vadd.f32 %v738, %v1181
      %vm1183 = vcmp.eq.f32.partialorder %v1182, 0.0
      %v1184 = vsel %vm1183, 1.0, %v1182
      %v1185 = vrcp.pop %v1184
      %v1186 = vmul.f32 %v1184, %v1185
      %v1187 = vsub.f32 1.0, %v1186
      %v1188 = vmul.f32 %v1185, %v1187
      %v1189 = vadd.f32 %v1185, %v1188
      %vm1190 = vweird.f32 %v1184
      %vm1191 = vweird.f32 %v1185
      %vm1192 = vmor %vm1190, %vm1191
      %v1193 = vsel %vm1192, %v1185, %v1189
      %v1194 = vand.u32 2147483647, %v1184
      %vm1195 = vcmp.eq.f32.partialorder %v1194, 8.507059e+37
      %v1196 = vand.u32 %v1184, 2147483648
      %v1197 = vor.u32 1.1754944e-38, %v1196
      %v1198 = vsel %vm1195, %v1197, %v1193
      %v1199 = vmul.f32 %v738, %v1198
      %v1200 = vsel %vm1183, 0.0, %v1199
      %v1201 = vld [vmem:[#allocation13] sm:$0xff]
      %v1202 = vsub.f32 %v1201, %v761
      %v1204 = vsel %vm154, %v1202, 0
      %1206 = vmatpush.msra.mxu0 0.0
      %1207 = vmatpush.msra.mxu0 0.0
      %1208 = vmatpush.msra.mxu0 0.0
      %1209 = vmatpush.msra.mxu0 0.0
      %1210 = vmatpush.msra.mxu0 0.0
      %1211 = vmatpush.msra.mxu0 0.0
      %1212 = vmatpush.msra.mxu0 0.0
      %1213 = vmatpush.msra.mxu0 0.0
      %1214 = vmatpush.msra.mxu0 0.0
      %1215 = vmatpush.msra.mxu0 0.0
      %1216 = vmatpush.msra.mxu0 0.0
      %1217 = vmatpush.msra.mxu0 0.0
      %1218 = vmatpush.msra.mxu0 %v786
      %1219 = vmatpush.msra.mxu0 %v778
      %1220 = vmatpush.msra.mxu0 %v770
      %1221 = vmatpush.msra.mxu0 %v762
      %1222 = vmatmul.f32.gmra.mxu0 %v1204
      %v1223 = vpop.f32.mrf.mxu0
      %v1224 = vadd.f32 0.0, %v1223
      %1225 = vdwg.mxu0
      %1226 = vmatpush.msra.mxu0 0.0
      %1227 = vmatpush.msra.mxu0 0.0
      %1228 = vmatpush.msra.mxu0 0.0
      %1229 = vmatpush.msra.mxu0 0.0
      %1230 = vmatpush.msra.mxu0 0.0
      %1231 = vmatpush.msra.mxu0 0.0
      %1232 = vmatpush.msra.mxu0 0.0
      %1233 = vmatpush.msra.mxu0 0.0
      %1234 = vmatpush.msra.mxu0 0.0
      %1235 = vmatpush.msra.mxu0 0.0
      %1236 = vmatpush.msra.mxu0 0.0
      %1237 = vmatpush.msra.mxu0 0.0
      %1238 = vmatpush.msra.mxu0 %v787
      %1239 = vmatpush.msra.mxu0 %v779
      %1240 = vmatpush.msra.mxu0 %v771
      %1241 = vmatpush.msra.mxu0 %v763
      %1242 = vmatmul.f32.gmra.mxu0 %v1204
      %v1243 = vpop.f32.mrf.mxu0
      %v1244 = vadd.f32 0.0, %v1243
      %1245 = vdwg.mxu0
      %1246 = vmatpush.msra.mxu0 0.0
      %1247 = vmatpush.msra.mxu0 0.0
      %1248 = vmatpush.msra.mxu0 0.0
      %1249 = vmatpush.msra.mxu0 0.0
      %1250 = vmatpush.msra.mxu0 0.0
      %1251 = vmatpush.msra.mxu0 0.0
      %1252 = vmatpush.msra.mxu0 0.0
      %1253 = vmatpush.msra.mxu0 0.0
      %1254 = vmatpush.msra.mxu0 0.0
      %1255 = vmatpush.msra.mxu0 0.0
      %1256 = vmatpush.msra.mxu0 0.0
      %1257 = vmatpush.msra.mxu0 0.0
      %1258 = vmatpush.msra.mxu0 %v788
      %1259 = vmatpush.msra.mxu0 %v780
      %1260 = vmatpush.msra.mxu0 %v772
      %1261 = vmatpush.msra.mxu0 %v764
      %1262 = vmatmul.f32.gmra.mxu0 %v1204
      %v1263 = vpop.f32.mrf.mxu0
      %v1264 = vadd.f32 0.0, %v1263
      %1265 = vdwg.mxu0
      %1266 = vmatpush.msra.mxu0 0.0
      %1267 = vmatpush.msra.mxu0 0.0
      %1268 = vmatpush.msra.mxu0 0.0
      %1269 = vmatpush.msra.mxu0 0.0
      %1270 = vmatpush.msra.mxu0 0.0
      %1271 = vmatpush.msra.mxu0 0.0
      %1272 = vmatpush.msra.mxu0 0.0
      %1273 = vmatpush.msra.mxu0 0.0
      %1274 = vmatpush.msra.mxu0 0.0
      %1275 = vmatpush.msra.mxu0 0.0
      %1276 = vmatpush.msra.mxu0 0.0
      %1277 = vmatpush.msra.mxu0 0.0
      %1278 = vmatpush.msra.mxu0 %v789
      %1279 = vmatpush.msra.mxu0 %v781
      %1280 = vmatpush.msra.mxu0 %v773
      %1281 = vmatpush.msra.mxu0 %v765
      %1282 = vmatmul.f32.gmra.mxu0 %v1204
      %v1283 = vpop.f32.mrf.mxu0
      %v1284 = vadd.f32 0.0, %v1283
      %1285 = vdwg.mxu0
      %1286 = vmatpush.msra.mxu0 0.0
      %1287 = vmatpush.msra.mxu0 0.0
      %1288 = vmatpush.msra.mxu0 0.0
      %1289 = vmatpush.msra.mxu0 0.0
      %1290 = vmatpush.msra.mxu0 0.0
      %1291 = vmatpush.msra.mxu0 0.0
      %1292 = vmatpush.msra.mxu0 0.0
      %1293 = vmatpush.msra.mxu0 0.0
      %1294 = vmatpush.msra.mxu0 0.0
      %1295 = vmatpush.msra.mxu0 0.0
      %1296 = vmatpush.msra.mxu0 0.0
      %1297 = vmatpush.msra.mxu0 0.0
      %1298 = vmatpush.msra.mxu0 %v790
      %1299 = vmatpush.msra.mxu0 %v782
      %1300 = vmatpush.msra.mxu0 %v774
      %1301 = vmatpush.msra.mxu0 %v766
      %1302 = vmatmul.f32.gmra.mxu0 %v1204
      %v1303 = vpop.f32.mrf.mxu0
      %v1304 = vadd.f32 0.0, %v1303
      %1305 = vdwg.mxu0
      %1306 = vmatpush.msra.mxu0 0.0
      %1307 = vmatpush.msra.mxu0 0.0
      %1308 = vmatpush.msra.mxu0 0.0
      %1309 = vmatpush.msra.mxu0 0.0
      %1310 = vmatpush.msra.mxu0 0.0
      %1311 = vmatpush.msra.mxu0 0.0
      %1312 = vmatpush.msra.mxu0 0.0
      %1313 = vmatpush.msra.mxu0 0.0
      %1314 = vmatpush.msra.mxu0 0.0
      %1315 = vmatpush.msra.mxu0 0.0
      %1316 = vmatpush.msra.mxu0 0.0
      %1317 = vmatpush.msra.mxu0 0.0
      %1318 = vmatpush.msra.mxu0 %v791
      %1319 = vmatpush.msra.mxu0 %v783
      %1320 = vmatpush.msra.mxu0 %v775
      %1321 = vmatpush.msra.mxu0 %v767
      %1322 = vmatmul.f32.gmra.mxu0 %v1204
      %v1323 = vpop.f32.mrf.mxu0
      %v1324 = vadd.f32 0.0, %v1323
      %1325 = vdwg.mxu0
      %1326 = vmatpush.msra.mxu0 0.0
      %1327 = vmatpush.msra.mxu0 0.0
      %1328 = vmatpush.msra.mxu0 0.0
      %1329 = vmatpush.msra.mxu0 0.0
      %1330 = vmatpush.msra.mxu0 0.0
      %1331 = vmatpush.msra.mxu0 0.0
      %1332 = vmatpush.msra.mxu0 0.0
      %1333 = vmatpush.msra.mxu0 0.0
      %1334 = vmatpush.msra.mxu0 0.0
      %1335 = vmatpush.msra.mxu0 0.0
      %1336 = vmatpush.msra.mxu0 0.0
      %1337 = vmatpush.msra.mxu0 0.0
      %1338 = vmatpush.msra.mxu0 %v792
      %1339 = vmatpush.msra.mxu0 %v784
      %1340 = vmatpush.msra.mxu0 %v776
      %1341 = vmatpush.msra.mxu0 %v768
      %1342 = vmatmul.f32.gmra.mxu0 %v1204
      %v1343 = vpop.f32.mrf.mxu0
      %v1344 = vadd.f32 0.0, %v1343
      %1345 = vdwg.mxu0
      %1346 = vmatpush.msra.mxu0 0.0
      %1347 = vmatpush.msra.mxu0 0.0
      %1348 = vmatpush.msra.mxu0 0.0
      %1349 = vmatpush.msra.mxu0 0.0
      %1350 = vmatpush.msra.mxu0 0.0
      %1351 = vmatpush.msra.mxu0 0.0
      %1352 = vmatpush.msra.mxu0 0.0
      %1353 = vmatpush.msra.mxu0 0.0
      %1354 = vmatpush.msra.mxu0 0.0
      %1355 = vmatpush.msra.mxu0 0.0
      %1356 = vmatpush.msra.mxu0 0.0
      %1357 = vmatpush.msra.mxu0 0.0
      %1358 = vmatpush.msra.mxu0 %v793
      %1359 = vmatpush.msra.mxu0 %v785
      %1360 = vmatpush.msra.mxu0 %v777
      %1361 = vmatpush.msra.mxu0 %v769
      %1362 = vmatmul.f32.gmra.mxu0 %v1204
      %v1363 = vpop.f32.mrf.mxu0
      %v1364 = vadd.f32 0.0, %v1363
      %1365 = vdwg.mxu0
      %1366 = vmatpush.msra.mxu0 0.0
      %1367 = vmatpush.msra.mxu0 0.0
      %1368 = vmatpush.msra.mxu0 0.0
      %1369 = vmatpush.msra.mxu0 0.0
      %1370 = vmatpush.msra.mxu0 0.0
      %1371 = vmatpush.msra.mxu0 0.0
      %1372 = vmatpush.msra.mxu0 0.0
      %1373 = vmatpush.msra.mxu0 0.0
      %1374 = vmatpush.msra.mxu0 0.0
      %1375 = vmatpush.msra.mxu0 0.0
      %1376 = vmatpush.msra.mxu0 0.0
      %1377 = vmatpush.msra.mxu0 0.0
      %1378 = vmatpush.msra.mxu0 %v981
      %1379 = vmatpush.msra.mxu0 %v973
      %1380 = vmatpush.msra.mxu0 %v965
      %1381 = vmatpush.msra.mxu0 %v957
      %1382 = vmatmul.f32.gmra.mxu0 %v1204
      %v1383 = vpop.f32.mrf.mxu0
      %v1384 = vadd.f32 0.0, %v1383
      %1385 = vdwg.mxu0
      %1386 = vmatpush.msra.mxu0 0.0
      %1387 = vmatpush.msra.mxu0 0.0
      %1388 = vmatpush.msra.mxu0 0.0
      %1389 = vmatpush.msra.mxu0 0.0
      %1390 = vmatpush.msra.mxu0 0.0
      %1391 = vmatpush.msra.mxu0 0.0
      %1392 = vmatpush.msra.mxu0 0.0
      %1393 = vmatpush.msra.mxu0 0.0
      %1394 = vmatpush.msra.mxu0 0.0
      %1395 = vmatpush.msra.mxu0 0.0
      %1396 = vmatpush.msra.mxu0 0.0
      %1397 = vmatpush.msra.mxu0 0.0
      %1398 = vmatpush.msra.mxu0 %v982
      %1399 = vmatpush.msra.mxu0 %v974
      %1400 = vmatpush.msra.mxu0 %v966
      %1401 = vmatpush.msra.mxu0 %v958
      %1402 = vmatmul.f32.gmra.mxu0 %v1204
      %v1403 = vpop.f32.mrf.mxu0
      %v1404 = vadd.f32 0.0, %v1403
      %1405 = vdwg.mxu0
      %1406 = vmatpush.msra.mxu0 0.0
      %1407 = vmatpush.msra.mxu0 0.0
      %1408 = vmatpush.msra.mxu0 0.0
      %1409 = vmatpush.msra.mxu0 0.0
      %1410 = vmatpush.msra.mxu0 0.0
      %1411 = vmatpush.msra.mxu0 0.0
      %1412 = vmatpush.msra.mxu0 0.0
      %1413 = vmatpush.msra.mxu0 0.0
      %1414 = vmatpush.msra.mxu0 0.0
      %1415 = vmatpush.msra.mxu0 0.0
      %1416 = vmatpush.msra.mxu0 0.0
      %1417 = vmatpush.msra.mxu0 0.0
      %1418 = vmatpush.msra.mxu0 %v983
      %1419 = vmatpush.msra.mxu0 %v975
      %1420 = vmatpush.msra.mxu0 %v967
      %1421 = vmatpush.msra.mxu0 %v959
      %1422 = vmatmul.f32.gmra.mxu0 %v1204
      %v1423 = vpop.f32.mrf.mxu0
      %v1424 = vadd.f32 0.0, %v1423
      %1425 = vdwg.mxu0
      %1426 = vmatpush.msra.mxu0 0.0
      %1427 = vmatpush.msra.mxu0 0.0
      %1428 = vmatpush.msra.mxu0 0.0
      %1429 = vmatpush.msra.mxu0 0.0
      %1430 = vmatpush.msra.mxu0 0.0
      %1431 = vmatpush.msra.mxu0 0.0
      %1432 = vmatpush.msra.mxu0 0.0
      %1433 = vmatpush.msra.mxu0 0.0
      %1434 = vmatpush.msra.mxu0 0.0
      %1435 = vmatpush.msra.mxu0 0.0
      %1436 = vmatpush.msra.mxu0 0.0
      %1437 = vmatpush.msra.mxu0 0.0
      %1438 = vmatpush.msra.mxu0 %v984
      %1439 = vmatpush.msra.mxu0 %v976
      %1440 = vmatpush.msra.mxu0 %v968
      %1441 = vmatpush.msra.mxu0 %v960
      %1442 = vmatmul.f32.gmra.mxu0 %v1204
      %v1443 = vpop.f32.mrf.mxu0
      %v1444 = vadd.f32 0.0, %v1443
      %1445 = vdwg.mxu0
      %1446 = vmatpush.msra.mxu0 0.0
      %1447 = vmatpush.msra.mxu0 0.0
      %1448 = vmatpush.msra.mxu0 0.0
      %1449 = vmatpush.msra.mxu0 0.0
      %1450 = vmatpush.msra.mxu0 0.0
      %1451 = vmatpush.msra.mxu0 0.0
      %1452 = vmatpush.msra.mxu0 0.0
      %1453 = vmatpush.msra.mxu0 0.0
      %1454 = vmatpush.msra.mxu0 0.0
      %1455 = vmatpush.msra.mxu0 0.0
      %1456 = vmatpush.msra.mxu0 0.0
      %1457 = vmatpush.msra.mxu0 0.0
      %1458 = vmatpush.msra.mxu0 %v985
      %1459 = vmatpush.msra.mxu0 %v977
      %1460 = vmatpush.msra.mxu0 %v969
      %1461 = vmatpush.msra.mxu0 %v961
      %1462 = vmatmul.f32.gmra.mxu0 %v1204
      %v1463 = vpop.f32.mrf.mxu0
      %v1464 = vadd.f32 0.0, %v1463
      %1465 = vdwg.mxu0
      %1466 = vmatpush.msra.mxu0 0.0
      %1467 = vmatpush.msra.mxu0 0.0
      %1468 = vmatpush.msra.mxu0 0.0
      %1469 = vmatpush.msra.mxu0 0.0
      %1470 = vmatpush.msra.mxu0 0.0
      %1471 = vmatpush.msra.mxu0 0.0
      %1472 = vmatpush.msra.mxu0 0.0
      %1473 = vmatpush.msra.mxu0 0.0
      %1474 = vmatpush.msra.mxu0 0.0
      %1475 = vmatpush.msra.mxu0 0.0
      %1476 = vmatpush.msra.mxu0 0.0
      %1477 = vmatpush.msra.mxu0 0.0
      %1478 = vmatpush.msra.mxu0 %v986
      %1479 = vmatpush.msra.mxu0 %v978
      %1480 = vmatpush.msra.mxu0 %v970
      %1481 = vmatpush.msra.mxu0 %v962
      %1482 = vmatmul.f32.gmra.mxu0 %v1204
      %v1483 = vpop.f32.mrf.mxu0
      %v1484 = vadd.f32 0.0, %v1483
      %1485 = vdwg.mxu0
      %1486 = vmatpush.msra.mxu0 0.0
      %1487 = vmatpush.msra.mxu0 0.0
      %1488 = vmatpush.msra.mxu0 0.0
      %1489 = vmatpush.msra.mxu0 0.0
      %1490 = vmatpush.msra.mxu0 0.0
      %1491 = vmatpush.msra.mxu0 0.0
      %1492 = vmatpush.msra.mxu0 0.0
      %1493 = vmatpush.msra.mxu0 0.0
      %1494 = vmatpush.msra.mxu0 0.0
      %1495 = vmatpush.msra.mxu0 0.0
      %1496 = vmatpush.msra.mxu0 0.0
      %1497 = vmatpush.msra.mxu0 0.0
      %1498 = vmatpush.msra.mxu0 %v987
      %1499 = vmatpush.msra.mxu0 %v979
      %1500 = vmatpush.msra.mxu0 %v971
      %1501 = vmatpush.msra.mxu0 %v963
      %1502 = vmatmul.f32.gmra.mxu0 %v1204
      %v1503 = vpop.f32.mrf.mxu0
      %v1504 = vadd.f32 0.0, %v1503
      %1505 = vdwg.mxu0
      %1506 = vmatpush.msra.mxu0 0.0
      %1507 = vmatpush.msra.mxu0 0.0
      %1508 = vmatpush.msra.mxu0 0.0
      %1509 = vmatpush.msra.mxu0 0.0
      %1510 = vmatpush.msra.mxu0 0.0
      %1511 = vmatpush.msra.mxu0 0.0
      %1512 = vmatpush.msra.mxu0 0.0
      %1513 = vmatpush.msra.mxu0 0.0
      %1514 = vmatpush.msra.mxu0 0.0
      %1515 = vmatpush.msra.mxu0 0.0
      %1516 = vmatpush.msra.mxu0 0.0
      %1517 = vmatpush.msra.mxu0 0.0
      %1518 = vmatpush.msra.mxu0 %v988
      %1519 = vmatpush.msra.mxu0 %v980
      %1520 = vmatpush.msra.mxu0 %v972
      %1521 = vmatpush.msra.mxu0 %v964
      %1522 = vmatmul.f32.gmra.mxu0 %v1204
      %v1523 = vpop.f32.mrf.mxu0
      %v1524 = vadd.f32 0.0, %v1523
      %1525 = vdwg.mxu0
      %v1526 = vld [vmem:[#allocation11] sm:$0xff]
      %v1527 = vld [vmem:[#allocation11 + $0x8] sm:$0xff]
      %v1528 = vld [vmem:[#allocation11 + $0x10] sm:$0xff]
      %v1529 = vld [vmem:[#allocation11 + $0x18] sm:$0xff]
      %v1530 = vld [vmem:[#allocation11 + $0x20] sm:$0xff]
      %v1531 = vld [vmem:[#allocation11 + $0x28] sm:$0xff]
      %v1532 = vld [vmem:[#allocation11 + $0x30] sm:$0xff]
      %v1533 = vld [vmem:[#allocation11 + $0x38] sm:$0xff]
      %v1534 = vsub.f32 1.0, %v1200
      %1536 = vset.pattern.permute.xlu0 0
      %1537 = vperm.xlu0 %1536, %v1534
      %v1538 = vpop.permute.xlu0 %1537
      %v1540 = vmul.f32 %v1526, %v1538
      %v1541 = vmul.f32 %v1527, %v1538
      %v1542 = vmul.f32 %v1528, %v1538
      %v1543 = vmul.f32 %v1529, %v1538
      %v1544 = vmul.f32 %v1530, %v1538
      %v1545 = vmul.f32 %v1531, %v1538
      %v1546 = vmul.f32 %v1532, %v1538
      %v1547 = vmul.f32 %v1533, %v1538
      %1549 = vset.pattern.permute.xlu0 0
      %1550 = vperm.xlu0 %1549, %v1200
      %v1551 = vpop.permute.xlu0 %1550
      %v1553 = vmul.f32 %v1173, %v1551
      %v1554 = vmul.f32 %v1174, %v1551
      %v1555 = vmul.f32 %v1175, %v1551
      %v1556 = vmul.f32 %v1176, %v1551
      %v1557 = vmul.f32 %v1177, %v1551
      %v1558 = vmul.f32 %v1178, %v1551
      %v1559 = vmul.f32 %v1179, %v1551
      %v1560 = vmul.f32 %v1180, %v1551
      %v1561 = vadd.f32 %v1540, %v1553
      %v1562 = vadd.f32 %v1541, %v1554
      %v1563 = vadd.f32 %v1542, %v1555
      %v1564 = vadd.f32 %v1543, %v1556
      %v1565 = vadd.f32 %v1544, %v1557
      %v1566 = vadd.f32 %v1545, %v1558
      %v1567 = vadd.f32 %v1546, %v1559
      %v1568 = vadd.f32 %v1547, %v1560
      %v1569 = vmul.f32 %v1200, %v1534
      %v1570 = vmul.f32 %v1224, %v1384
      %v1571 = vmul.f32 %v1244, %v1404
      %v1572 = vmul.f32 %v1264, %v1424
      %v1573 = vmul.f32 %v1284, %v1444
      %v1574 = vmul.f32 %v1304, %v1464
      %v1575 = vmul.f32 %v1324, %v1484
      %v1576 = vmul.f32 %v1344, %v1504
      %v1577 = vmul.f32 %v1364, %v1524
      %1579 = vset.pattern.permute.xlu0 0
      %1580 = vperm.xlu0 %1579, %v1569
      %v1581 = vpop.permute.xlu0 %1580
      %v1583 = vmul.f32 %v1581, %v1570
      %v1584 = vmul.f32 %v1581, %v1571
      %v1585 = vmul.f32 %v1581, %v1572
      %v1586 = vmul.f32 %v1581, %v1573
      %v1587 = vmul.f32 %v1581, %v1574
      %v1588 = vmul.f32 %v1581, %v1575
      %v1589 = vmul.f32 %v1581, %v1576
      %v1590 = vmul.f32 %v1581, %v1577
      %v1591 = vadd.f32 %v1561, %v1583
      %v1592 = vadd.f32 %v1562, %v1584
      %v1593 = vadd.f32 %v1563, %v1585
      %v1594 = vadd.f32 %v1564, %v1586
      %v1595 = vadd.f32 %v1565, %v1587
      %v1596 = vadd.f32 %v1566, %v1588
      %v1597 = vadd.f32 %v1567, %v1589
      %v1598 = vadd.f32 %v1568, %v1590
      %1599 = vst [vmem:[#allocation14] sm:$0xff] %v1591
      %1600 = vst [vmem:[#allocation14 + $0x8] sm:$0xff] %v1592
      %1601 = vst [vmem:[#allocation14 + $0x10] sm:$0xff] %v1593
      %1602 = vst [vmem:[#allocation14 + $0x18] sm:$0xff] %v1594
      %1603 = vst [vmem:[#allocation14 + $0x20] sm:$0xff] %v1595
      %1604 = vst [vmem:[#allocation14 + $0x28] sm:$0xff] %v1596
      %1605 = vst [vmem:[#allocation14 + $0x30] sm:$0xff] %v1597
      %1606 = vst [vmem:[#allocation14 + $0x38] sm:$0xff] %v1598
      %v1607 = vld [vmem:[#allocation13] sm:$0xff]
      %v1608 = vmul.f32 %v1607, %v1538
      %v1609 = vmul.f32 %v761, %v1551
      %v1610 = vadd.f32 %v1608, %v1609
      %1611 = vst.msk [vmem:[#allocation15] sm:$0xff] %vm154, %v1610
      %1612 = vst.msk [vmem:[%s9] sm:$0xff] %vm127, %v1182
    $region57: #{tpu_custom_call.1} parent=1 // pred_fallthru
      _
    // Predicated region
    $region58: #{tpu_custom_call.1} parent=1 // pred_check
      _
    $region59: #{tpu_custom_call.1} parent=1 // pred_check_branch
      %1614 = sbr.rel (0) target = $region61
    $region60: #{tpu_custom_call.1} parent=1 // pred_region
      %1616 = vsyncadd [#allocation7], 0
      %s1618 = sshll.u32 [#allocation14], 4
      %s1619 = int_to_ptr.vmem [resolvable:$true] %s1618
      %s1620 = sshll.u32 %s7, 4
      %s1621 = int_to_ptr.hbm [resolvable:$true] %s1620
      %1623 = dma.vmem_to_hbm [thread:$0]  %s1619, 1024, %s1621, [#allocation7]
    $region61: #{tpu_custom_call.1} parent=1 // pred_fallthru
      _
    // Predicated region
    $region62: #{tpu_custom_call.1} parent=1 // pred_check
      _
    $region63: #{tpu_custom_call.1} parent=1 // pred_check_branch
      %1625 = sbr.rel (0) target = $region65
    $region64: #{tpu_custom_call.1} parent=1 // pred_region
      %1627 = vsyncadd [#allocation16], 0
      %s1629 = sshll.u32 [#allocation15], 4
      %s1630 = int_to_ptr.vmem [resolvable:$true] %s1629
      %s1631 = sshll.u32 %s8, 4
      %s1632 = int_to_ptr.hbm [resolvable:$true] %s1631
      %1634 = dma.vmem_to_hbm [thread:$0]  %s1630, 128, %s1632, [#allocation16]
    $region65: #{tpu_custom_call.1} parent=1 // pred_fallthru
      _
    // Predicated region
    $region66: #{tpu_custom_call.1} parent=1 // pred_check
      _
    $region67: #{tpu_custom_call.1} parent=1 // pred_check_branch
      %1636 = sbr.rel (0) target = $region69
    $region68: #{tpu_custom_call.1} parent=1 // pred_region
      _
    $region69: #{tpu_custom_call.1} parent=1 // pred_fallthru
      _
    // Predicated region
    $region70: #{tpu_custom_call.1} parent=1 // pred_check
      _
    $region71: #{tpu_custom_call.1} parent=1 // pred_check_branch
      %1638 = sbr.rel (0) target = $region73
    $region72: #{tpu_custom_call.1} parent=1 // pred_region
      %1640 = dma.done [#allocation7], 1024
    $region73: #{tpu_custom_call.1} parent=1 // pred_fallthru
      _
    // Predicated region
    $region74: #{tpu_custom_call.1} parent=1 // pred_check
      _
    $region75: #{tpu_custom_call.1} parent=1 // pred_check_branch
      %1642 = sbr.rel (0) target = $region77
    $region76: #{tpu_custom_call.1} parent=1 // pred_region
      %1644 = dma.done [#allocation16], 128
    $region77: #{tpu_custom_call.1} parent=1 // pred_fallthru
      _
    // Predicated region
    $region78: #{tpu_custom_call.1} parent=1 // pred_check
      _
    $region79: #{tpu_custom_call.1} parent=1 // pred_check_branch
      %1646 = sbr.rel (0) target = $region81
    $region80: #{tpu_custom_call.1} parent=1 // pred_region
      _
    $region81: #{tpu_custom_call.1} parent=1 // pred_fallthru
      _
    %1647 = vsyncpa [#allocation6], 1
    %1648 = vsyncpa [#allocation9], 1
    %1649 = vsyncpa [#allocation12], 1
    %1650 = vsyncpa [#allocation7], 1
    %1651 = vsyncpa [#allocation16], 1

</llo_original>
